<compile_context>
chip_gen: v7x
topology: tpu7x:2x2x1
jax: 0.10.0
libtpu: 0.0.40
codegen_flags: <defaults>
</compile_context>

<pallas_src>
import functools

import jax
import jax.numpy as jnp
import numpy as np
from jax.experimental import pallas as pl
from jax.experimental.pallas import tpu as pltpu


def _thomas_sweep(rhs, coeff, sol_ref, *, eps):
    """Solve independent tridiagonal systems, one per lane.

    rhs   : (n, S) right-hand sides in sweep layout (S = B*C*other_dim on lanes).
    coeff : (n, S) diffusion coefficients; a_i = c_i = -coeff_i,
            b_i = 1 + 2*coeff_i (1 + coeff_i at both ends), +eps in every denominator
            -- exactly the reference thomas_solver_batch_optimized.
    sol_ref: VMEM scratch; the solution is written into sol_ref[0:n, 0:S].

    Forward sweep and back-substitution carry their recurrence operands in registers;
    each row op is a full-lane-width vector op.
    """
    n, S = rhs.shape
    c_rows = []          # c*_i
    d_rows = []          # d*_i
    prev_c = None
    prev_d = None
    for i in range(n):
        ci = coeff[i:i + 1, :]
        di = rhs[i:i + 1, :]
        if i == 0:
            denom = (1.0 + ci) + eps
        elif i == n - 1:
            denom = (1.0 + ci) + ci * prev_c + eps          # b_i - a_i * c*_{i-1} + eps
        else:
            denom = (1.0 + 2.0 * ci) + ci * prev_c + eps
        inv = pl.reciprocal(denom)                          # exact; one EUP op, no divides
        m = ci * inv                                        # coeff_i / denom
        if i == 0:
            cur_d = di * inv
        else:
            cur_d = di * inv + m * prev_d                   # (d_i - a_i * d*_{i-1}) / denom
        if i < n - 1:
            prev_c = -m                                     # c*_i = c_i / denom
            c_rows.append(prev_c)
        d_rows.append(cur_d)
        prev_d = cur_d

    # Back-substitution: x_{n-1} = d*_{n-1}; carry x in a register, write each row once.
    x = d_rows[n - 1]
    sol_ref[n - 1:n, 0:S] = x
    for i in range(n - 2, -1, -1):
        x = d_rows[i] - c_rows[i] * x
        sol_ref[i:i + 1, 0:S] = x


def _diffusion_kernel(cm_ref, u_ref, axb_ref, axt_ref, byb_ref, byt_ref,
                      o_ref, sol_ref, *, dt, dx, dy, num_steps, eps):
    """Fused forward.  cm_ref is SMEM (C, C); everything else VMEM.

    o_ref holds the evolving state (natural (B, C, H, W) layout) for the whole kernel.
    axb/axt : (W, B*C*H) alpha base / time-coeff in x-sweep layout (columns (b, c, h)).
    byb/byt : (H, B*C*W) beta  base / time-coeff in y-sweep layout (columns (b, c, w)).
    sol_ref : (max(H,W), B*C*max(H,W)) scratch holding the rows of one half-step solve.
    """
    B, C, H, W = o_ref.shape
    half_dt = 0.5 * dt
    kx = half_dt / (dx * dx)
    ky = half_dt / (dy * dy)
    Sx = B * C * H      # systems for the x sweep
    Sy = B * C * W      # systems for the y sweep

    # ---- loop-invariant loads hoisted out of the time-step loop ----
    cm = [[cm_ref[i, j] for j in range(C)] for i in range(C)]   # SMEM scalars
    axb = axb_ref[...]
    axt = axt_ref[...]
    byb = byb_ref[...]
    byt = byt_ref[...]

    # State starts as the input and stays resident in VMEM for all steps.
    o_ref[...] = u_ref[...]

    @pl.loop(0, num_steps)
    def _(step):
        t0 = step.astype(jnp.float32) * dt
        u = o_ref[...]                                          # (B, C, H, W)

        # -- learnable channel mixing: C is tiny -> unrolled scalar MACs.
        #    (switch to a lane-dense MXU matmul if C grows to >= ~16)
        chans = [u[:, j:j + 1] for j in range(C)]               # read all before writing
        mixed = []
        for i in range(C):
            acc = cm[i][0] * chans[0]
            for j in range(1, C):
                acc = acc + cm[i][j] * chans[j]
            mixed.append(acc)
        u = jnp.concatenate(mixed, axis=1)                      # (B, C, H, W)

        # -- implicit x half-step: solve along W, systems (b, c, h) on the lane axis.
        coeff_x = jnp.clip(axb + axt * t0, eps, 10.0) * kx      # (W, B*C*H)
        ux = jnp.transpose(u.reshape(Sx, W))                    # (W, B*C*H) lane-dense
        _thomas_sweep(ux, coeff_x, sol_ref, eps=eps)
        u = jnp.transpose(sol_ref[0:W, 0:Sx]).reshape(B, C, H, W)

        # -- implicit y half-step: solve along H, systems (b, c, w) on the lane axis.
        t1 = t0 + half_dt
        coeff_y = jnp.clip(byb + byt * t1, eps, 10.0) * ky      # (H, B*C*W)
        uy = jnp.transpose(jnp.swapaxes(u, 2, 3).reshape(Sy, H))    # (H, B*C*W)
        _thomas_sweep(uy, coeff_y, sol_ref, eps=eps)
        sy = sol_ref[0:H, 0:Sy]
        o_ref[...] = jnp.swapaxes(jnp.transpose(sy).reshape(B, C, W, H), 2, 3)


def learnable_diffusion_forward(u, alpha_base, alpha_time_coeff, beta_base,
                                beta_time_coeff, channel_mixing, *,
                                dt=0.001, dx=1.0, dy=1.0, num_steps=10, eps=1e-6):
    B, C, H, W = u.shape
    f32 = jnp.float32
    u = u.astype(f32)

    # Pre-relayout the learnable coefficient fields into the two lane-dense sweep
    # layouts ONCE, in plain JAX, outside the kernel (they are tiny and step-invariant
    # up to the clip/scale done in-kernel):
    #   x sweep: (W, B*C*H) with columns ordered (b, c, h)
    #   y sweep: (H, B*C*W) with columns ordered (b, c, w)
    def to_x_layout(p):
        return jnp.transpose(jnp.broadcast_to(p.astype(f32), (B, C, H, W))
                             .reshape(B * C * H, W))

    def to_y_layout(p):
        return jnp.transpose(jnp.swapaxes(jnp.broadcast_to(p.astype(f32), (B, C, H, W)),
                                          2, 3).reshape(B * C * W, H))

    axb = to_x_layout(alpha_base)
    axt = to_x_layout(alpha_time_coeff)
    byb = to_y_layout(beta_base)
    byt = to_y_layout(beta_time_coeff)

    nmax = max(H, W)
    smax = B * C * nmax

    kernel = functools.partial(_diffusion_kernel, dt=float(dt), dx=float(dx),
                               dy=float(dy), num_steps=int(num_steps), eps=float(eps))
    vmem = pltpu.MemorySpace.VMEM
    return pl.pallas_call(
        kernel,
        out_shape=jax.ShapeDtypeStruct((B, C, H, W), f32),
        in_specs=[
            pl.BlockSpec(memory_space=pltpu.MemorySpace.SMEM),  # channel_mixing (C, C)
            pl.BlockSpec(memory_space=vmem),                    # u
            pl.BlockSpec(memory_space=vmem),                    # alpha base  (x layout)
            pl.BlockSpec(memory_space=vmem),                    # alpha time  (x layout)
            pl.BlockSpec(memory_space=vmem),                    # beta  base  (y layout)
            pl.BlockSpec(memory_space=vmem),                    # beta  time  (y layout)
        ],
        out_specs=pl.BlockSpec(memory_space=vmem),
        scratch_shapes=[
            pltpu.VMEM((nmax, smax), f32),   # solved rows of the current half-step
        ],
    )(channel_mixing.astype(f32), u, axb, axt, byb, byt)


# ----------------------------- pure NumPy reference -----------------------------

def _thomas_ref(a, b, c, d, eps):
    M, N = d.shape
    c_star = np.zeros((M, N), np.float32)
    d_star = np.zeros((M, N), np.float32)
    denom0 = b[:, 0] + eps
    c_star[:, 0] = c[:, 0] / denom0
    d_star[:, 0] = d[:, 0] / denom0
    for i in range(1, N):
        denom = b[:, i] - a[:, i] * c_star[:, i - 1] + eps
        if i < N - 1:
            c_star[:, i] = c[:, i] / denom
        else:
            c_star[:, i] = 0.0
        d_star[:, i] = (d[:, i] - a[:, i] * d_star[:, i - 1]) / denom
    x = np.zeros((M, N), np.float32)
    x[:, -1] = d_star[:, -1]
    for i in range(N - 2, -1, -1):
        x[:, i] = d_star[:, i] - c_star[:, i] * x[:, i + 1]
    return x


def _diffuse_dir_ref(u2d, coeff2d, eps):
    a = -coeff2d
    c = -coeff2d
    b = 1.0 + 2.0 * coeff2d
    b[:, 0] = 1.0 + coeff2d[:, 0]
    b[:, -1] = 1.0 + coeff2d[:, -1]
    return _thomas_ref(a, b, c, u2d, eps)


def _reference_forward(u, alpha_base, alpha_tc, beta_base, beta_tc, cm,
                       dt, dx, dy, num_steps, eps):
    u = u.astype(np.float32).copy()
    B, C, H, W = u.shape
    t = 0.0
    for _ in range(num_steps):
        alpha = np.clip(alpha_base + alpha_tc * t, eps, 10.0).astype(np.float32)
        u = np.einsum("ij,bjhw->bihw", cm, u).astype(np.float32)
        coeff = (np.broadcast_to(alpha, (B, C, H, W)) * (dt / 2) / dx ** 2).astype(np.float32)
        u = _diffuse_dir_ref(u.reshape(B * C * H, W).copy(),
                             coeff.reshape(B * C * H, W).copy(), eps).reshape(B, C, H, W)
        t += dt / 2
        beta = np.clip(beta_base + beta_tc * t, eps, 10.0).astype(np.float32)
        coeff = (np.broadcast_to(beta, (B, C, H, W)) * (dt / 2) / dy ** 2).astype(np.float32)
        u_t = np.ascontiguousarray(u.transpose(0, 1, 3, 2)).reshape(B * C * W, H)
        c_t = np.ascontiguousarray(coeff.transpose(0, 1, 3, 2)).reshape(B * C * W, H)
        u = _diffuse_dir_ref(u_t, c_t, eps).reshape(B, C, W, H).transpose(0, 1, 3, 2).copy()
        t += dt / 2
    return u


if __name__ == "__main__":
    B, C, SZ = 2, 3, 16
    dt, dx, dy, num_steps, eps = 0.001, 1.0, 1.0, 10, 1e-6

    key = jax.random.PRNGKey(0)
    k1, k2, k3, k4, k5, k6 = jax.random.split(key, 6)
    u = jax.random.normal(k1, (B, C, SZ, SZ), dtype=jnp.float32)
    alpha_base = 1.0 + 0.1 * jax.random.normal(k2, (C, SZ, SZ), dtype=jnp.float32)
    beta_base = 1.0 + 0.1 * jax.random.normal(k3, (C, SZ, SZ), dtype=jnp.float32)
    alpha_tc = 0.1 * jax.random.normal(k4, (C, SZ, SZ), dtype=jnp.float32)
    beta_tc = 0.1 * jax.random.normal(k5, (C, SZ, SZ), dtype=jnp.float32)
    channel_mixing = (jnp.eye(C, dtype=jnp.float32)
                      + 0.01 * jax.random.normal(k6, (C, C), dtype=jnp.float32))

    out = learnable_diffusion_forward(
        u, alpha_base, alpha_tc, beta_base, beta_tc, channel_mixing,
        dt=dt, dx=dx, dy=dy, num_steps=num_steps, eps=eps)
    out = jax.block_until_ready(out)

    ref = _reference_forward(np.asarray(u), np.asarray(alpha_base), np.asarray(alpha_tc),
                             np.asarray(beta_base), np.asarray(beta_tc),
                             np.asarray(channel_mixing), dt, dx, dy, num_steps, eps)
    np.testing.assert_allclose(np.asarray(out), ref, rtol=1e-4, atol=1e-4)

    print("KERNEL_OK")
</pallas_src>

<mosaic_0001>
module attributes {stable_mosaic.version = 11 : i64} {
  func.func @_diffusion_kernel(%arg0: memref<3x3xf32, #tpu.memory_space<smem>>, %arg1: memref<2x3x16x16xf32, #tpu.memory_space<vmem>>, %arg2: memref<16x96xf32, #tpu.memory_space<vmem>>, %arg3: memref<16x96xf32, #tpu.memory_space<vmem>>, %arg4: memref<16x96xf32, #tpu.memory_space<vmem>>, %arg5: memref<16x96xf32, #tpu.memory_space<vmem>>, %arg6: memref<2x3x16x16xf32, #tpu.memory_space<vmem>>, %arg7: memref<16x96xf32, #tpu.memory_space<vmem>>) attributes {dimension_semantics = [], scalar_prefetch = 0 : i64, scratch_operands = 1 : i64, tpu.core_type = #tpu.core_type<tc>} {
    %c0 = arith.constant 0 : index
    %c0_0 = arith.constant 0 : index
    %0 = memref.load %arg0[%c0, %c0_0] : memref<3x3xf32, #tpu.memory_space<smem>>
    %c0_1 = arith.constant 0 : index
    %c1 = arith.constant 1 : index
    %1 = memref.load %arg0[%c0_1, %c1] : memref<3x3xf32, #tpu.memory_space<smem>>
    %c0_2 = arith.constant 0 : index
    %c2 = arith.constant 2 : index
    %2 = memref.load %arg0[%c0_2, %c2] : memref<3x3xf32, #tpu.memory_space<smem>>
    %c1_3 = arith.constant 1 : index
    %c0_4 = arith.constant 0 : index
    %3 = memref.load %arg0[%c1_3, %c0_4] : memref<3x3xf32, #tpu.memory_space<smem>>
    %c1_5 = arith.constant 1 : index
    %c1_6 = arith.constant 1 : index
    %4 = memref.load %arg0[%c1_5, %c1_6] : memref<3x3xf32, #tpu.memory_space<smem>>
    %c1_7 = arith.constant 1 : index
    %c2_8 = arith.constant 2 : index
    %5 = memref.load %arg0[%c1_7, %c2_8] : memref<3x3xf32, #tpu.memory_space<smem>>
    %c2_9 = arith.constant 2 : index
    %c0_10 = arith.constant 0 : index
    %6 = memref.load %arg0[%c2_9, %c0_10] : memref<3x3xf32, #tpu.memory_space<smem>>
    %c2_11 = arith.constant 2 : index
    %c1_12 = arith.constant 1 : index
    %7 = memref.load %arg0[%c2_11, %c1_12] : memref<3x3xf32, #tpu.memory_space<smem>>
    %c2_13 = arith.constant 2 : index
    %c2_14 = arith.constant 2 : index
    %8 = memref.load %arg0[%c2_13, %c2_14] : memref<3x3xf32, #tpu.memory_space<smem>>
    %c0_15 = arith.constant 0 : index
    %c0_16 = arith.constant 0 : index
    %9 = vector.load %arg2[%c0_15, %c0_16] : memref<16x96xf32, #tpu.memory_space<vmem>>, vector<16x96xf32>
    %c0_17 = arith.constant 0 : index
    %c0_18 = arith.constant 0 : index
    %10 = vector.load %arg3[%c0_17, %c0_18] : memref<16x96xf32, #tpu.memory_space<vmem>>, vector<16x96xf32>
    %c0_19 = arith.constant 0 : index
    %c0_20 = arith.constant 0 : index
    %11 = vector.load %arg4[%c0_19, %c0_20] : memref<16x96xf32, #tpu.memory_space<vmem>>, vector<16x96xf32>
    %c0_21 = arith.constant 0 : index
    %c0_22 = arith.constant 0 : index
    %12 = vector.load %arg5[%c0_21, %c0_22] : memref<16x96xf32, #tpu.memory_space<vmem>>, vector<16x96xf32>
    %c0_23 = arith.constant 0 : index
    %c0_24 = arith.constant 0 : index
    %c0_25 = arith.constant 0 : index
    %c0_26 = arith.constant 0 : index
    %13 = vector.load %arg1[%c0_23, %c0_24, %c0_25, %c0_26] : memref<2x3x16x16xf32, #tpu.memory_space<vmem>>, vector<2x3x16x16xf32>
    %c0_27 = arith.constant 0 : index
    %c0_28 = arith.constant 0 : index
    %c0_29 = arith.constant 0 : index
    %c0_30 = arith.constant 0 : index
    %14 = vector.load %arg6[%c0_27, %c0_28, %c0_29, %c0_30] : memref<2x3x16x16xf32, #tpu.memory_space<vmem>>, vector<2x3x16x16xf32>
    tpu.vector_store %arg6[%c0_27, %c0_28, %c0_29, %c0_30], %13 {strides = array<i32>} : memref<2x3x16x16xf32, #tpu.memory_space<vmem>>, vector<2x3x16x16xf32>,
    %c0_i32 = arith.constant 0 : i32
    %c10_i32 = arith.constant 10 : i32
    %15 = arith.addi %c0_i32, %c10_i32 : i32
    %c1_i32 = arith.constant 1 : i32
    scf.for %arg8 = %c0_i32 to %15 step %c1_i32  : i32 {
      %c1_i32_32 = arith.constant 1 : i32
      %16 = arith.muli %arg8, %c1_i32_32 : i32
      %c0_i32_33 = arith.constant 0 : i32
      %17 = arith.addi %c0_i32_33, %16 : i32
      %18 = arith.sitofp %17 : i32 to f32
      %cst = arith.constant 1.000000e-03 : f32
      %19 = arith.mulf %18, %cst : f32
      %c0_34 = arith.constant 0 : index
      %c0_35 = arith.constant 0 : index
      %c0_36 = arith.constant 0 : index
      %c0_37 = arith.constant 0 : index
      %20 = vector.load %arg6[%c0_34, %c0_35, %c0_36, %c0_37] : memref<2x3x16x16xf32, #tpu.memory_space<vmem>>, vector<2x3x16x16xf32>
      %21 = vector.extract_strided_slice %20 {offsets = [0, 0, 0, 0], sizes = [2, 1, 16, 16], strides = [1, 1, 1, 1]} : vector<2x3x16x16xf32> to vector<2x1x16x16xf32>
      %22 = vector.extract_strided_slice %20 {offsets = [0, 1, 0, 0], sizes = [2, 1, 16, 16], strides = [1, 1, 1, 1]} : vector<2x3x16x16xf32> to vector<2x1x16x16xf32>
      %23 = vector.extract_strided_slice %20 {offsets = [0, 2, 0, 0], sizes = [2, 1, 16, 16], strides = [1, 1, 1, 1]} : vector<2x3x16x16xf32> to vector<2x1x16x16xf32>
      %24 = vector.broadcast %0 : f32 to vector<2x1x16x16xf32>
      %25 = arith.mulf %24, %21 : vector<2x1x16x16xf32>
      %26 = vector.broadcast %1 : f32 to vector<2x1x16x16xf32>
      %27 = arith.mulf %26, %22 : vector<2x1x16x16xf32>
      %28 = arith.addf %25, %27 : vector<2x1x16x16xf32>
      %29 = vector.broadcast %2 : f32 to vector<2x1x16x16xf32>
      %30 = arith.mulf %29, %23 : vector<2x1x16x16xf32>
      %31 = arith.addf %28, %30 : vector<2x1x16x16xf32>
      %32 = vector.broadcast %3 : f32 to vector<2x1x16x16xf32>
      %33 = arith.mulf %32, %21 : vector<2x1x16x16xf32>
      %34 = vector.broadcast %4 : f32 to vector<2x1x16x16xf32>
      %35 = arith.mulf %34, %22 : vector<2x1x16x16xf32>
      %36 = arith.addf %33, %35 : vector<2x1x16x16xf32>
      %37 = vector.broadcast %5 : f32 to vector<2x1x16x16xf32>
      %38 = arith.mulf %37, %23 : vector<2x1x16x16xf32>
      %39 = arith.addf %36, %38 : vector<2x1x16x16xf32>
      %40 = vector.broadcast %6 : f32 to vector<2x1x16x16xf32>
      %41 = arith.mulf %40, %21 : vector<2x1x16x16xf32>
      %42 = vector.broadcast %7 : f32 to vector<2x1x16x16xf32>
      %43 = arith.mulf %42, %22 : vector<2x1x16x16xf32>
      %44 = arith.addf %41, %43 : vector<2x1x16x16xf32>
      %45 = vector.broadcast %8 : f32 to vector<2x1x16x16xf32>
      %46 = arith.mulf %45, %23 : vector<2x1x16x16xf32>
      %47 = arith.addf %44, %46 : vector<2x1x16x16xf32>
      %48 = tpu.concatenate %31, %39, %47 in 1 : vector<2x1x16x16xf32>, vector<2x1x16x16xf32>, vector<2x1x16x16xf32> -> vector<2x3x16x16xf32>
      %49 = vector.broadcast %19 : f32 to vector<16x96xf32>
      %50 = arith.mulf %10, %49 : vector<16x96xf32>
      %51 = arith.addf %9, %50 : vector<16x96xf32>
      %cst_38 = arith.constant 9.99999997E-7 : f32
      %cst_39 = arith.constant 1.000000e+01 : f32
      %52 = vector.broadcast %cst_38 : f32 to vector<16x96xf32>
      %53 = arith.maximumf %52, %51 : vector<16x96xf32>
      %54 = vector.broadcast %cst_39 : f32 to vector<16x96xf32>
      %55 = arith.minimumf %54, %53 : vector<16x96xf32>
      %cst_40 = arith.constant 5.000000e-04 : f32
      %56 = vector.broadcast %cst_40 : f32 to vector<16x96xf32>
      %57 = arith.mulf %55, %56 : vector<16x96xf32>
      %58 = vector.shape_cast %48 : vector<2x3x16x16xf32> to vector<96x16xf32>
      %59 = tpu.transpose %58, [1, 0] : vector<96x16xf32> -> vector<16x96xf32>
      %60 = vector.extract_strided_slice %57 {offsets = [0, 0], sizes = [1, 96], strides = [1, 1]} : vector<16x96xf32> to vector<1x96xf32>
      %61 = vector.extract_strided_slice %59 {offsets = [0, 0], sizes = [1, 96], strides = [1, 1]} : vector<16x96xf32> to vector<1x96xf32>
      %cst_41 = arith.constant 1.000000e+00 : f32
      %62 = vector.broadcast %cst_41 : f32 to vector<1x96xf32>
      %63 = arith.addf %62, %60 : vector<1x96xf32>
      %cst_42 = arith.constant 9.99999997E-7 : f32
      %64 = vector.broadcast %cst_42 : f32 to vector<1x96xf32>
      %65 = arith.addf %63, %64 : vector<1x96xf32>
      %66 = tpu.reciprocal %65 : vector<1x96xf32> -> vector<1x96xf32>
      %67 = arith.mulf %60, %66 : vector<1x96xf32>
      %68 = arith.mulf %61, %66 : vector<1x96xf32>
      %cst_43 = arith.constant 0.000000e+00 : f32
      %69 = vector.broadcast %cst_43 : f32 to vector<1x96xf32>
      %70 = arith.subf %69, %67 : vector<1x96xf32>
      %71 = vector.extract_strided_slice %57 {offsets = [1, 0], sizes = [1, 96], strides = [1, 1]} : vector<16x96xf32> to vector<1x96xf32>
      %72 = vector.extract_strided_slice %59 {offsets = [1, 0], sizes = [1, 96], strides = [1, 1]} : vector<16x96xf32> to vector<1x96xf32>
      %cst_44 = arith.constant 2.000000e+00 : f32
      %73 = vector.broadcast %cst_44 : f32 to vector<1x96xf32>
      %74 = arith.mulf %73, %71 : vector<1x96xf32>
      %cst_45 = arith.constant 1.000000e+00 : f32
      %75 = vector.broadcast %cst_45 : f32 to vector<1x96xf32>
      %76 = arith.addf %75, %74 : vector<1x96xf32>
      %77 = arith.mulf %71, %70 : vector<1x96xf32>
      %78 = arith.addf %76, %77 : vector<1x96xf32>
      %cst_46 = arith.constant 9.99999997E-7 : f32
      %79 = vector.broadcast %cst_46 : f32 to vector<1x96xf32>
      %80 = arith.addf %78, %79 : vector<1x96xf32>
      %81 = tpu.reciprocal %80 : vector<1x96xf32> -> vector<1x96xf32>
      %82 = arith.mulf %71, %81 : vector<1x96xf32>
      %83 = arith.mulf %72, %81 : vector<1x96xf32>
      %84 = arith.mulf %82, %68 : vector<1x96xf32>
      %85 = arith.addf %83, %84 : vector<1x96xf32>
      %cst_47 = arith.constant 0.000000e+00 : f32
      %86 = vector.broadcast %cst_47 : f32 to vector<1x96xf32>
      %87 = arith.subf %86, %82 : vector<1x96xf32>
      %88 = vector.extract_strided_slice %57 {offsets = [2, 0], sizes = [1, 96], strides = [1, 1]} : vector<16x96xf32> to vector<1x96xf32>
      %89 = vector.extract_strided_slice %59 {offsets = [2, 0], sizes = [1, 96], strides = [1, 1]} : vector<16x96xf32> to vector<1x96xf32>
      %cst_48 = arith.constant 2.000000e+00 : f32
      %90 = vector.broadcast %cst_48 : f32 to vector<1x96xf32>
      %91 = arith.mulf %90, %88 : vector<1x96xf32>
      %cst_49 = arith.constant 1.000000e+00 : f32
      %92 = vector.broadcast %cst_49 : f32 to vector<1x96xf32>
      %93 = arith.addf %92, %91 : vector<1x96xf32>
      %94 = arith.mulf %88, %87 : vector<1x96xf32>
      %95 = arith.addf %93, %94 : vector<1x96xf32>
      %cst_50 = arith.constant 9.99999997E-7 : f32
      %96 = vector.broadcast %cst_50 : f32 to vector<1x96xf32>
      %97 = arith.addf %95, %96 : vector<1x96xf32>
      %98 = tpu.reciprocal %97 : vector<1x96xf32> -> vector<1x96xf32>
      %99 = arith.mulf %88, %98 : vector<1x96xf32>
      %100 = arith.mulf %89, %98 : vector<1x96xf32>
      %101 = arith.mulf %99, %85 : vector<1x96xf32>
      %102 = arith.addf %100, %101 : vector<1x96xf32>
      %cst_51 = arith.constant 0.000000e+00 : f32
      %103 = vector.broadcast %cst_51 : f32 to vector<1x96xf32>
      %104 = arith.subf %103, %99 : vector<1x96xf32>
      %105 = vector.extract_strided_slice %57 {offsets = [3, 0], sizes = [1, 96], strides = [1, 1]} : vector<16x96xf32> to vector<1x96xf32>
      %106 = vector.extract_strided_slice %59 {offsets = [3, 0], sizes = [1, 96], strides = [1, 1]} : vector<16x96xf32> to vector<1x96xf32>
      %cst_52 = arith.constant 2.000000e+00 : f32
      %107 = vector.broadcast %cst_52 : f32 to vector<1x96xf32>
      %108 = arith.mulf %107, %105 : vector<1x96xf32>
      %cst_53 = arith.constant 1.000000e+00 : f32
      %109 = vector.broadcast %cst_53 : f32 to vector<1x96xf32>
      %110 = arith.addf %109, %108 : vector<1x96xf32>
      %111 = arith.mulf %105, %104 : vector<1x96xf32>
      %112 = arith.addf %110, %111 : vector<1x96xf32>
      %cst_54 = arith.constant 9.99999997E-7 : f32
      %113 = vector.broadcast %cst_54 : f32 to vector<1x96xf32>
      %114 = arith.addf %112, %113 : vector<1x96xf32>
      %115 = tpu.reciprocal %114 : vector<1x96xf32> -> vector<1x96xf32>
      %116 = arith.mulf %105, %115 : vector<1x96xf32>
      %117 = arith.mulf %106, %115 : vector<1x96xf32>
      %118 = arith.mulf %116, %102 : vector<1x96xf32>
      %119 = arith.addf %117, %118 : vector<1x96xf32>
      %cst_55 = arith.constant 0.000000e+00 : f32
      %120 = vector.broadcast %cst_55 : f32 to vector<1x96xf32>
      %121 = arith.subf %120, %116 : vector<1x96xf32>
      %122 = vector.extract_strided_slice %57 {offsets = [4, 0], sizes = [1, 96], strides = [1, 1]} : vector<16x96xf32> to vector<1x96xf32>
      %123 = vector.extract_strided_slice %59 {offsets = [4, 0], sizes = [1, 96], strides = [1, 1]} : vector<16x96xf32> to vector<1x96xf32>
      %cst_56 = arith.constant 2.000000e+00 : f32
      %124 = vector.broadcast %cst_56 : f32 to vector<1x96xf32>
      %125 = arith.mulf %124, %122 : vector<1x96xf32>
      %cst_57 = arith.constant 1.000000e+00 : f32
      %126 = vector.broadcast %cst_57 : f32 to vector<1x96xf32>
      %127 = arith.addf %126, %125 : vector<1x96xf32>
      %128 = arith.mulf %122, %121 : vector<1x96xf32>
      %129 = arith.addf %127, %128 : vector<1x96xf32>
      %cst_58 = arith.constant 9.99999997E-7 : f32
      %130 = vector.broadcast %cst_58 : f32 to vector<1x96xf32>
      %131 = arith.addf %129, %130 : vector<1x96xf32>
      %132 = tpu.reciprocal %131 : vector<1x96xf32> -> vector<1x96xf32>
      %133 = arith.mulf %122, %132 : vector<1x96xf32>
      %134 = arith.mulf %123, %132 : vector<1x96xf32>
      %135 = arith.mulf %133, %119 : vector<1x96xf32>
      %136 = arith.addf %134, %135 : vector<1x96xf32>
      %cst_59 = arith.constant 0.000000e+00 : f32
      %137 = vector.broadcast %cst_59 : f32 to vector<1x96xf32>
      %138 = arith.subf %137, %133 : vector<1x96xf32>
      %139 = vector.extract_strided_slice %57 {offsets = [5, 0], sizes = [1, 96], strides = [1, 1]} : vector<16x96xf32> to vector<1x96xf32>
      %140 = vector.extract_strided_slice %59 {offsets = [5, 0], sizes = [1, 96], strides = [1, 1]} : vector<16x96xf32> to vector<1x96xf32>
      %cst_60 = arith.constant 2.000000e+00 : f32
      %141 = vector.broadcast %cst_60 : f32 to vector<1x96xf32>
      %142 = arith.mulf %141, %139 : vector<1x96xf32>
      %cst_61 = arith.constant 1.000000e+00 : f32
      %143 = vector.broadcast %cst_61 : f32 to vector<1x96xf32>
      %144 = arith.addf %143, %142 : vector<1x96xf32>
      %145 = arith.mulf %139, %138 : vector<1x96xf32>
      %146 = arith.addf %144, %145 : vector<1x96xf32>
      %cst_62 = arith.constant 9.99999997E-7 : f32
      %147 = vector.broadcast %cst_62 : f32 to vector<1x96xf32>
      %148 = arith.addf %146, %147 : vector<1x96xf32>
      %149 = tpu.reciprocal %148 : vector<1x96xf32> -> vector<1x96xf32>
      %150 = arith.mulf %139, %149 : vector<1x96xf32>
      %151 = arith.mulf %140, %149 : vector<1x96xf32>
      %152 = arith.mulf %150, %136 : vector<1x96xf32>
      %153 = arith.addf %151, %152 : vector<1x96xf32>
      %cst_63 = arith.constant 0.000000e+00 : f32
      %154 = vector.broadcast %cst_63 : f32 to vector<1x96xf32>
      %155 = arith.subf %154, %150 : vector<1x96xf32>
      %156 = vector.extract_strided_slice %57 {offsets = [6, 0], sizes = [1, 96], strides = [1, 1]} : vector<16x96xf32> to vector<1x96xf32>
      %157 = vector.extract_strided_slice %59 {offsets = [6, 0], sizes = [1, 96], strides = [1, 1]} : vector<16x96xf32> to vector<1x96xf32>
      %cst_64 = arith.constant 2.000000e+00 : f32
      %158 = vector.broadcast %cst_64 : f32 to vector<1x96xf32>
      %159 = arith.mulf %158, %156 : vector<1x96xf32>
      %cst_65 = arith.constant 1.000000e+00 : f32
      %160 = vector.broadcast %cst_65 : f32 to vector<1x96xf32>
      %161 = arith.addf %160, %159 : vector<1x96xf32>
      %162 = arith.mulf %156, %155 : vector<1x96xf32>
      %163 = arith.addf %161, %162 : vector<1x96xf32>
      %cst_66 = arith.constant 9.99999997E-7 : f32
      %164 = vector.broadcast %cst_66 : f32 to vector<1x96xf32>
      %165 = arith.addf %163, %164 : vector<1x96xf32>
      %166 = tpu.reciprocal %165 : vector<1x96xf32> -> vector<1x96xf32>
      %167 = arith.mulf %156, %166 : vector<1x96xf32>
      %168 = arith.mulf %157, %166 : vector<1x96xf32>
      %169 = arith.mulf %167, %153 : vector<1x96xf32>
      %170 = arith.addf %168, %169 : vector<1x96xf32>
      %cst_67 = arith.constant 0.000000e+00 : f32
      %171 = vector.broadcast %cst_67 : f32 to vector<1x96xf32>
      %172 = arith.subf %171, %167 : vector<1x96xf32>
      %173 = vector.extract_strided_slice %57 {offsets = [7, 0], sizes = [1, 96], strides = [1, 1]} : vector<16x96xf32> to vector<1x96xf32>
      %174 = vector.extract_strided_slice %59 {offsets = [7, 0], sizes = [1, 96], strides = [1, 1]} : vector<16x96xf32> to vector<1x96xf32>
      %cst_68 = arith.constant 2.000000e+00 : f32
      %175 = vector.broadcast %cst_68 : f32 to vector<1x96xf32>
      %176 = arith.mulf %175, %173 : vector<1x96xf32>
      %cst_69 = arith.constant 1.000000e+00 : f32
      %177 = vector.broadcast %cst_69 : f32 to vector<1x96xf32>
      %178 = arith.addf %177, %176 : vector<1x96xf32>
      %179 = arith.mulf %173, %172 : vector<1x96xf32>
      %180 = arith.addf %178, %179 : vector<1x96xf32>
      %cst_70 = arith.constant 9.99999997E-7 : f32
      %181 = vector.broadcast %cst_70 : f32 to vector<1x96xf32>
      %182 = arith.addf %180, %181 : vector<1x96xf32>
      %183 = tpu.reciprocal %182 : vector<1x96xf32> -> vector<1x96xf32>
      %184 = arith.mulf %173, %183 : vector<1x96xf32>
      %185 = arith.mulf %174, %183 : vector<1x96xf32>
      %186 = arith.mulf %184, %170 : vector<1x96xf32>
      %187 = arith.addf %185, %186 : vector<1x96xf32>
      %cst_71 = arith.constant 0.000000e+00 : f32
      %188 = vector.broadcast %cst_71 : f32 to vector<1x96xf32>
      %189 = arith.subf %188, %184 : vector<1x96xf32>
      %190 = vector.extract_strided_slice %57 {offsets = [8, 0], sizes = [1, 96], strides = [1, 1]} : vector<16x96xf32> to vector<1x96xf32>
      %191 = vector.extract_strided_slice %59 {offsets = [8, 0], sizes = [1, 96], strides = [1, 1]} : vector<16x96xf32> to vector<1x96xf32>
      %cst_72 = arith.constant 2.000000e+00 : f32
      %192 = vector.broadcast %cst_72 : f32 to vector<1x96xf32>
      %193 = arith.mulf %192, %190 : vector<1x96xf32>
      %cst_73 = arith.constant 1.000000e+00 : f32
      %194 = vector.broadcast %cst_73 : f32 to vector<1x96xf32>
      %195 = arith.addf %194, %193 : vector<1x96xf32>
      %196 = arith.mulf %190, %189 : vector<1x96xf32>
      %197 = arith.addf %195, %196 : vector<1x96xf32>
      %cst_74 = arith.constant 9.99999997E-7 : f32
      %198 = vector.broadcast %cst_74 : f32 to vector<1x96xf32>
      %199 = arith.addf %197, %198 : vector<1x96xf32>
      %200 = tpu.reciprocal %199 : vector<1x96xf32> -> vector<1x96xf32>
      %201 = arith.mulf %190, %200 : vector<1x96xf32>
      %202 = arith.mulf %191, %200 : vector<1x96xf32>
      %203 = arith.mulf %201, %187 : vector<1x96xf32>
      %204 = arith.addf %202, %203 : vector<1x96xf32>
      %cst_75 = arith.constant 0.000000e+00 : f32
      %205 = vector.broadcast %cst_75 : f32 to vector<1x96xf32>
      %206 = arith.subf %205, %201 : vector<1x96xf32>
      %207 = vector.extract_strided_slice %57 {offsets = [9, 0], sizes = [1, 96], strides = [1, 1]} : vector<16x96xf32> to vector<1x96xf32>
      %208 = vector.extract_strided_slice %59 {offsets = [9, 0], sizes = [1, 96], strides = [1, 1]} : vector<16x96xf32> to vector<1x96xf32>
      %cst_76 = arith.constant 2.000000e+00 : f32
      %209 = vector.broadcast %cst_76 : f32 to vector<1x96xf32>
      %210 = arith.mulf %209, %207 : vector<1x96xf32>
      %cst_77 = arith.constant 1.000000e+00 : f32
      %211 = vector.broadcast %cst_77 : f32 to vector<1x96xf32>
      %212 = arith.addf %211, %210 : vector<1x96xf32>
      %213 = arith.mulf %207, %206 : vector<1x96xf32>
      %214 = arith.addf %212, %213 : vector<1x96xf32>
      %cst_78 = arith.constant 9.99999997E-7 : f32
      %215 = vector.broadcast %cst_78 : f32 to vector<1x96xf32>
      %216 = arith.addf %214, %215 : vector<1x96xf32>
      %217 = tpu.reciprocal %216 : vector<1x96xf32> -> vector<1x96xf32>
      %218 = arith.mulf %207, %217 : vector<1x96xf32>
      %219 = arith.mulf %208, %217 : vector<1x96xf32>
      %220 = arith.mulf %218, %204 : vector<1x96xf32>
      %221 = arith.addf %219, %220 : vector<1x96xf32>
      %cst_79 = arith.constant 0.000000e+00 : f32
      %222 = vector.broadcast %cst_79 : f32 to vector<1x96xf32>
      %223 = arith.subf %222, %218 : vector<1x96xf32>
      %224 = vector.extract_strided_slice %57 {offsets = [10, 0], sizes = [1, 96], strides = [1, 1]} : vector<16x96xf32> to vector<1x96xf32>
      %225 = vector.extract_strided_slice %59 {offsets = [10, 0], sizes = [1, 96], strides = [1, 1]} : vector<16x96xf32> to vector<1x96xf32>
      %cst_80 = arith.constant 2.000000e+00 : f32
      %226 = vector.broadcast %cst_80 : f32 to vector<1x96xf32>
      %227 = arith.mulf %226, %224 : vector<1x96xf32>
      %cst_81 = arith.constant 1.000000e+00 : f32
      %228 = vector.broadcast %cst_81 : f32 to vector<1x96xf32>
      %229 = arith.addf %228, %227 : vector<1x96xf32>
      %230 = arith.mulf %224, %223 : vector<1x96xf32>
      %231 = arith.addf %229, %230 : vector<1x96xf32>
      %cst_82 = arith.constant 9.99999997E-7 : f32
      %232 = vector.broadcast %cst_82 : f32 to vector<1x96xf32>
      %233 = arith.addf %231, %232 : vector<1x96xf32>
      %234 = tpu.reciprocal %233 : vector<1x96xf32> -> vector<1x96xf32>
      %235 = arith.mulf %224, %234 : vector<1x96xf32>
      %236 = arith.mulf %225, %234 : vector<1x96xf32>
      %237 = arith.mulf %235, %221 : vector<1x96xf32>
      %238 = arith.addf %236, %237 : vector<1x96xf32>
      %cst_83 = arith.constant 0.000000e+00 : f32
      %239 = vector.broadcast %cst_83 : f32 to vector<1x96xf32>
      %240 = arith.subf %239, %235 : vector<1x96xf32>
      %241 = vector.extract_strided_slice %57 {offsets = [11, 0], sizes = [1, 96], strides = [1, 1]} : vector<16x96xf32> to vector<1x96xf32>
      %242 = vector.extract_strided_slice %59 {offsets = [11, 0], sizes = [1, 96], strides = [1, 1]} : vector<16x96xf32> to vector<1x96xf32>
      %cst_84 = arith.constant 2.000000e+00 : f32
      %243 = vector.broadcast %cst_84 : f32 to vector<1x96xf32>
      %244 = arith.mulf %243, %241 : vector<1x96xf32>
      %cst_85 = arith.constant 1.000000e+00 : f32
      %245 = vector.broadcast %cst_85 : f32 to vector<1x96xf32>
      %246 = arith.addf %245, %244 : vector<1x96xf32>
      %247 = arith.mulf %241, %240 : vector<1x96xf32>
      %248 = arith.addf %246, %247 : vector<1x96xf32>
      %cst_86 = arith.constant 9.99999997E-7 : f32
      %249 = vector.broadcast %cst_86 : f32 to vector<1x96xf32>
      %250 = arith.addf %248, %249 : vector<1x96xf32>
      %251 = tpu.reciprocal %250 : vector<1x96xf32> -> vector<1x96xf32>
      %252 = arith.mulf %241, %251 : vector<1x96xf32>
      %253 = arith.mulf %242, %251 : vector<1x96xf32>
      %254 = arith.mulf %252, %238 : vector<1x96xf32>
      %255 = arith.addf %253, %254 : vector<1x96xf32>
      %cst_87 = arith.constant 0.000000e+00 : f32
      %256 = vector.broadcast %cst_87 : f32 to vector<1x96xf32>
      %257 = arith.subf %256, %252 : vector<1x96xf32>
      %258 = vector.extract_strided_slice %57 {offsets = [12, 0], sizes = [1, 96], strides = [1, 1]} : vector<16x96xf32> to vector<1x96xf32>
      %259 = vector.extract_strided_slice %59 {offsets = [12, 0], sizes = [1, 96], strides = [1, 1]} : vector<16x96xf32> to vector<1x96xf32>
      %cst_88 = arith.constant 2.000000e+00 : f32
      %260 = vector.broadcast %cst_88 : f32 to vector<1x96xf32>
      %261 = arith.mulf %260, %258 : vector<1x96xf32>
      %cst_89 = arith.constant 1.000000e+00 : f32
      %262 = vector.broadcast %cst_89 : f32 to vector<1x96xf32>
      %263 = arith.addf %262, %261 : vector<1x96xf32>
      %264 = arith.mulf %258, %257 : vector<1x96xf32>
      %265 = arith.addf %263, %264 : vector<1x96xf32>
      %cst_90 = arith.constant 9.99999997E-7 : f32
      %266 = vector.broadcast %cst_90 : f32 to vector<1x96xf32>
      %267 = arith.addf %265, %266 : vector<1x96xf32>
      %268 = tpu.reciprocal %267 : vector<1x96xf32> -> vector<1x96xf32>
      %269 = arith.mulf %258, %268 : vector<1x96xf32>
      %270 = arith.mulf %259, %268 : vector<1x96xf32>
      %271 = arith.mulf %269, %255 : vector<1x96xf32>
      %272 = arith.addf %270, %271 : vector<1x96xf32>
      %cst_91 = arith.constant 0.000000e+00 : f32
      %273 = vector.broadcast %cst_91 : f32 to vector<1x96xf32>
      %274 = arith.subf %273, %269 : vector<1x96xf32>
      %275 = vector.extract_strided_slice %57 {offsets = [13, 0], sizes = [1, 96], strides = [1, 1]} : vector<16x96xf32> to vector<1x96xf32>
      %276 = vector.extract_strided_slice %59 {offsets = [13, 0], sizes = [1, 96], strides = [1, 1]} : vector<16x96xf32> to vector<1x96xf32>
      %cst_92 = arith.constant 2.000000e+00 : f32
      %277 = vector.broadcast %cst_92 : f32 to vector<1x96xf32>
      %278 = arith.mulf %277, %275 : vector<1x96xf32>
      %cst_93 = arith.constant 1.000000e+00 : f32
      %279 = vector.broadcast %cst_93 : f32 to vector<1x96xf32>
      %280 = arith.addf %279, %278 : vector<1x96xf32>
      %281 = arith.mulf %275, %274 : vector<1x96xf32>
      %282 = arith.addf %280, %281 : vector<1x96xf32>
      %cst_94 = arith.constant 9.99999997E-7 : f32
      %283 = vector.broadcast %cst_94 : f32 to vector<1x96xf32>
      %284 = arith.addf %282, %283 : vector<1x96xf32>
      %285 = tpu.reciprocal %284 : vector<1x96xf32> -> vector<1x96xf32>
      %286 = arith.mulf %275, %285 : vector<1x96xf32>
      %287 = arith.mulf %276, %285 : vector<1x96xf32>
      %288 = arith.mulf %286, %272 : vector<1x96xf32>
      %289 = arith.addf %287, %288 : vector<1x96xf32>
      %cst_95 = arith.constant 0.000000e+00 : f32
      %290 = vector.broadcast %cst_95 : f32 to vector<1x96xf32>
      %291 = arith.subf %290, %286 : vector<1x96xf32>
      %292 = vector.extract_strided_slice %57 {offsets = [14, 0], sizes = [1, 96], strides = [1, 1]} : vector<16x96xf32> to vector<1x96xf32>
      %293 = vector.extract_strided_slice %59 {offsets = [14, 0], sizes = [1, 96], strides = [1, 1]} : vector<16x96xf32> to vector<1x96xf32>
      %cst_96 = arith.constant 2.000000e+00 : f32
      %294 = vector.broadcast %cst_96 : f32 to vector<1x96xf32>
      %295 = arith.mulf %294, %292 : vector<1x96xf32>
      %cst_97 = arith.constant 1.000000e+00 : f32
      %296 = vector.broadcast %cst_97 : f32 to vector<1x96xf32>
      %297 = arith.addf %296, %295 : vector<1x96xf32>
      %298 = arith.mulf %292, %291 : vector<1x96xf32>
      %299 = arith.addf %297, %298 : vector<1x96xf32>
      %cst_98 = arith.constant 9.99999997E-7 : f32
      %300 = vector.broadcast %cst_98 : f32 to vector<1x96xf32>
      %301 = arith.addf %299, %300 : vector<1x96xf32>
      %302 = tpu.reciprocal %301 : vector<1x96xf32> -> vector<1x96xf32>
      %303 = arith.mulf %292, %302 : vector<1x96xf32>
      %304 = arith.mulf %293, %302 : vector<1x96xf32>
      %305 = arith.mulf %303, %289 : vector<1x96xf32>
      %306 = arith.addf %304, %305 : vector<1x96xf32>
      %cst_99 = arith.constant 0.000000e+00 : f32
      %307 = vector.broadcast %cst_99 : f32 to vector<1x96xf32>
      %308 = arith.subf %307, %303 : vector<1x96xf32>
      %309 = vector.extract_strided_slice %57 {offsets = [15, 0], sizes = [1, 96], strides = [1, 1]} : vector<16x96xf32> to vector<1x96xf32>
      %310 = vector.extract_strided_slice %59 {offsets = [15, 0], sizes = [1, 96], strides = [1, 1]} : vector<16x96xf32> to vector<1x96xf32>
      %cst_100 = arith.constant 1.000000e+00 : f32
      %311 = vector.broadcast %cst_100 : f32 to vector<1x96xf32>
      %312 = arith.addf %311, %309 : vector<1x96xf32>
      %313 = arith.mulf %309, %308 : vector<1x96xf32>
      %314 = arith.addf %312, %313 : vector<1x96xf32>
      %cst_101 = arith.constant 9.99999997E-7 : f32
      %315 = vector.broadcast %cst_101 : f32 to vector<1x96xf32>
      %316 = arith.addf %314, %315 : vector<1x96xf32>
      %317 = tpu.reciprocal %316 : vector<1x96xf32> -> vector<1x96xf32>
      %318 = arith.mulf %309, %317 : vector<1x96xf32>
      %319 = arith.mulf %310, %317 : vector<1x96xf32>
      %320 = arith.mulf %318, %306 : vector<1x96xf32>
      %321 = arith.addf %319, %320 : vector<1x96xf32>
      %c15 = arith.constant 15 : index
      %c0_102 = arith.constant 0 : index
      %322 = vector.load %arg7[%c15, %c0_102] : memref<16x96xf32, #tpu.memory_space<vmem>>, vector<1x96xf32>
      tpu.vector_store %arg7[%c15, %c0_102], %321 {strides = array<i32>} : memref<16x96xf32, #tpu.memory_space<vmem>>, vector<1x96xf32>,
      %323 = arith.mulf %308, %321 : vector<1x96xf32>
      %324 = arith.subf %306, %323 : vector<1x96xf32>
      %c14 = arith.constant 14 : index
      %c0_103 = arith.constant 0 : index
      %325 = vector.load %arg7[%c14, %c0_103] : memref<16x96xf32, #tpu.memory_space<vmem>>, vector<1x96xf32>
      tpu.vector_store %arg7[%c14, %c0_103], %324 {strides = array<i32>} : memref<16x96xf32, #tpu.memory_space<vmem>>, vector<1x96xf32>,
      %326 = arith.mulf %291, %324 : vector<1x96xf32>
      %327 = arith.subf %289, %326 : vector<1x96xf32>
      %c13 = arith.constant 13 : index
      %c0_104 = arith.constant 0 : index
      %328 = vector.load %arg7[%c13, %c0_104] : memref<16x96xf32, #tpu.memory_space<vmem>>, vector<1x96xf32>
      tpu.vector_store %arg7[%c13, %c0_104], %327 {strides = array<i32>} : memref<16x96xf32, #tpu.memory_space<vmem>>, vector<1x96xf32>,
      %329 = arith.mulf %274, %327 : vector<1x96xf32>
      %330 = arith.subf %272, %329 : vector<1x96xf32>
      %c12 = arith.constant 12 : index
      %c0_105 = arith.constant 0 : index
      %331 = vector.load %arg7[%c12, %c0_105] : memref<16x96xf32, #tpu.memory_space<vmem>>, vector<1x96xf32>
      tpu.vector_store %arg7[%c12, %c0_105], %330 {strides = array<i32>} : memref<16x96xf32, #tpu.memory_space<vmem>>, vector<1x96xf32>,
      %332 = arith.mulf %257, %330 : vector<1x96xf32>
      %333 = arith.subf %255, %332 : vector<1x96xf32>
      %c11 = arith.constant 11 : index
      %c0_106 = arith.constant 0 : index
      %334 = vector.load %arg7[%c11, %c0_106] : memref<16x96xf32, #tpu.memory_space<vmem>>, vector<1x96xf32>
      tpu.vector_store %arg7[%c11, %c0_106], %333 {strides = array<i32>} : memref<16x96xf32, #tpu.memory_space<vmem>>, vector<1x96xf32>,
      %335 = arith.mulf %240, %333 : vector<1x96xf32>
      %336 = arith.subf %238, %335 : vector<1x96xf32>
      %c10 = arith.constant 10 : index
      %c0_107 = arith.constant 0 : index
      %337 = vector.load %arg7[%c10, %c0_107] : memref<16x96xf32, #tpu.memory_space<vmem>>, vector<1x96xf32>
      tpu.vector_store %arg7[%c10, %c0_107], %336 {strides = array<i32>} : memref<16x96xf32, #tpu.memory_space<vmem>>, vector<1x96xf32>,
      %338 = arith.mulf %223, %336 : vector<1x96xf32>
      %339 = arith.subf %221, %338 : vector<1x96xf32>
      %c9 = arith.constant 9 : index
      %c0_108 = arith.constant 0 : index
      %340 = vector.load %arg7[%c9, %c0_108] : memref<16x96xf32, #tpu.memory_space<vmem>>, vector<1x96xf32>
      tpu.vector_store %arg7[%c9, %c0_108], %339 {strides = array<i32>} : memref<16x96xf32, #tpu.memory_space<vmem>>, vector<1x96xf32>,
      %341 = arith.mulf %206, %339 : vector<1x96xf32>
      %342 = arith.subf %204, %341 : vector<1x96xf32>
      %c8 = arith.constant 8 : index
      %c0_109 = arith.constant 0 : index
      %343 = vector.load %arg7[%c8, %c0_109] : memref<16x96xf32, #tpu.memory_space<vmem>>, vector<1x96xf32>
      tpu.vector_store %arg7[%c8, %c0_109], %342 {strides = array<i32>} : memref<16x96xf32, #tpu.memory_space<vmem>>, vector<1x96xf32>,
      %344 = arith.mulf %189, %342 : vector<1x96xf32>
      %345 = arith.subf %187, %344 : vector<1x96xf32>
      %c7 = arith.constant 7 : index
      %c0_110 = arith.constant 0 : index
      %346 = vector.load %arg7[%c7, %c0_110] : memref<16x96xf32, #tpu.memory_space<vmem>>, vector<1x96xf32>
      tpu.vector_store %arg7[%c7, %c0_110], %345 {strides = array<i32>} : memref<16x96xf32, #tpu.memory_space<vmem>>, vector<1x96xf32>,
      %347 = arith.mulf %172, %345 : vector<1x96xf32>
      %348 = arith.subf %170, %347 : vector<1x96xf32>
      %c6 = arith.constant 6 : index
      %c0_111 = arith.constant 0 : index
      %349 = vector.load %arg7[%c6, %c0_111] : memref<16x96xf32, #tpu.memory_space<vmem>>, vector<1x96xf32>
      tpu.vector_store %arg7[%c6, %c0_111], %348 {strides = array<i32>} : memref<16x96xf32, #tpu.memory_space<vmem>>, vector<1x96xf32>,
      %350 = arith.mulf %155, %348 : vector<1x96xf32>
      %351 = arith.subf %153, %350 : vector<1x96xf32>
      %c5 = arith.constant 5 : index
      %c0_112 = arith.constant 0 : index
      %352 = vector.load %arg7[%c5, %c0_112] : memref<16x96xf32, #tpu.memory_space<vmem>>, vector<1x96xf32>
      tpu.vector_store %arg7[%c5, %c0_112], %351 {strides = array<i32>} : memref<16x96xf32, #tpu.memory_space<vmem>>, vector<1x96xf32>,
      %353 = arith.mulf %138, %351 : vector<1x96xf32>
      %354 = arith.subf %136, %353 : vector<1x96xf32>
      %c4 = arith.constant 4 : index
      %c0_113 = arith.constant 0 : index
      %355 = vector.load %arg7[%c4, %c0_113] : memref<16x96xf32, #tpu.memory_space<vmem>>, vector<1x96xf32>
      tpu.vector_store %arg7[%c4, %c0_113], %354 {strides = array<i32>} : memref<16x96xf32, #tpu.memory_space<vmem>>, vector<1x96xf32>,
      %356 = arith.mulf %121, %354 : vector<1x96xf32>
      %357 = arith.subf %119, %356 : vector<1x96xf32>
      %c3 = arith.constant 3 : index
      %c0_114 = arith.constant 0 : index
      %358 = vector.load %arg7[%c3, %c0_114] : memref<16x96xf32, #tpu.memory_space<vmem>>, vector<1x96xf32>
      tpu.vector_store %arg7[%c3, %c0_114], %357 {strides = array<i32>} : memref<16x96xf32, #tpu.memory_space<vmem>>, vector<1x96xf32>,
      %359 = arith.mulf %104, %357 : vector<1x96xf32>
      %360 = arith.subf %102, %359 : vector<1x96xf32>
      %c2_115 = arith.constant 2 : index
      %c0_116 = arith.constant 0 : index
      %361 = vector.load %arg7[%c2_115, %c0_116] : memref<16x96xf32, #tpu.memory_space<vmem>>, vector<1x96xf32>
      tpu.vector_store %arg7[%c2_115, %c0_116], %360 {strides = array<i32>} : memref<16x96xf32, #tpu.memory_space<vmem>>, vector<1x96xf32>,
      %362 = arith.mulf %87, %360 : vector<1x96xf32>
      %363 = arith.subf %85, %362 : vector<1x96xf32>
      %c1_117 = arith.constant 1 : index
      %c0_118 = arith.constant 0 : index
      %364 = vector.load %arg7[%c1_117, %c0_118] : memref<16x96xf32, #tpu.memory_space<vmem>>, vector<1x96xf32>
      tpu.vector_store %arg7[%c1_117, %c0_118], %363 {strides = array<i32>} : memref<16x96xf32, #tpu.memory_space<vmem>>, vector<1x96xf32>,
      %365 = arith.mulf %70, %363 : vector<1x96xf32>
      %366 = arith.subf %68, %365 : vector<1x96xf32>
      %c0_119 = arith.constant 0 : index
      %c0_120 = arith.constant 0 : index
      %367 = vector.load %arg7[%c0_119, %c0_120] : memref<16x96xf32, #tpu.memory_space<vmem>>, vector<1x96xf32>
      tpu.vector_store %arg7[%c0_119, %c0_120], %366 {strides = array<i32>} : memref<16x96xf32, #tpu.memory_space<vmem>>, vector<1x96xf32>,
      %c0_121 = arith.constant 0 : index
      %c0_122 = arith.constant 0 : index
      %368 = vector.load %arg7[%c0_121, %c0_122] : memref<16x96xf32, #tpu.memory_space<vmem>>, vector<16x96xf32>
      %369 = tpu.transpose %368, [1, 0] : vector<16x96xf32> -> vector<96x16xf32>
      %370 = vector.shape_cast %369 : vector<96x16xf32> to vector<2x3x16x16xf32>
      %cst_123 = arith.constant 5.000000e-04 : f32
      %371 = arith.addf %19, %cst_123 : f32
      %372 = vector.broadcast %371 : f32 to vector<16x96xf32>
      %373 = arith.mulf %12, %372 : vector<16x96xf32>
      %374 = arith.addf %11, %373 : vector<16x96xf32>
      %cst_124 = arith.constant 9.99999997E-7 : f32
      %cst_125 = arith.constant 1.000000e+01 : f32
      %375 = vector.broadcast %cst_124 : f32 to vector<16x96xf32>
      %376 = arith.maximumf %375, %374 : vector<16x96xf32>
      %377 = vector.broadcast %cst_125 : f32 to vector<16x96xf32>
      %378 = arith.minimumf %377, %376 : vector<16x96xf32>
      %cst_126 = arith.constant 5.000000e-04 : f32
      %379 = vector.broadcast %cst_126 : f32 to vector<16x96xf32>
      %380 = arith.mulf %378, %379 : vector<16x96xf32>
      %381 = tpu.transpose %370, [0, 1, 3, 2] : vector<2x3x16x16xf32> -> vector<2x3x16x16xf32>
      %382 = vector.shape_cast %381 : vector<2x3x16x16xf32> to vector<96x16xf32>
      %383 = tpu.transpose %382, [1, 0] : vector<96x16xf32> -> vector<16x96xf32>
      %384 = vector.extract_strided_slice %380 {offsets = [0, 0], sizes = [1, 96], strides = [1, 1]} : vector<16x96xf32> to vector<1x96xf32>
      %385 = vector.extract_strided_slice %383 {offsets = [0, 0], sizes = [1, 96], strides = [1, 1]} : vector<16x96xf32> to vector<1x96xf32>
      %cst_127 = arith.constant 1.000000e+00 : f32
      %386 = vector.broadcast %cst_127 : f32 to vector<1x96xf32>
      %387 = arith.addf %386, %384 : vector<1x96xf32>
      %cst_128 = arith.constant 9.99999997E-7 : f32
      %388 = vector.broadcast %cst_128 : f32 to vector<1x96xf32>
      %389 = arith.addf %387, %388 : vector<1x96xf32>
      %390 = tpu.reciprocal %389 : vector<1x96xf32> -> vector<1x96xf32>
      %391 = arith.mulf %384, %390 : vector<1x96xf32>
      %392 = arith.mulf %385, %390 : vector<1x96xf32>
      %cst_129 = arith.constant 0.000000e+00 : f32
      %393 = vector.broadcast %cst_129 : f32 to vector<1x96xf32>
      %394 = arith.subf %393, %391 : vector<1x96xf32>
      %395 = vector.extract_strided_slice %380 {offsets = [1, 0], sizes = [1, 96], strides = [1, 1]} : vector<16x96xf32> to vector<1x96xf32>
      %396 = vector.extract_strided_slice %383 {offsets = [1, 0], sizes = [1, 96], strides = [1, 1]} : vector<16x96xf32> to vector<1x96xf32>
      %cst_130 = arith.constant 2.000000e+00 : f32
      %397 = vector.broadcast %cst_130 : f32 to vector<1x96xf32>
      %398 = arith.mulf %397, %395 : vector<1x96xf32>
      %cst_131 = arith.constant 1.000000e+00 : f32
      %399 = vector.broadcast %cst_131 : f32 to vector<1x96xf32>
      %400 = arith.addf %399, %398 : vector<1x96xf32>
      %401 = arith.mulf %395, %394 : vector<1x96xf32>
      %402 = arith.addf %400, %401 : vector<1x96xf32>
      %cst_132 = arith.constant 9.99999997E-7 : f32
      %403 = vector.broadcast %cst_132 : f32 to vector<1x96xf32>
      %404 = arith.addf %402, %403 : vector<1x96xf32>
      %405 = tpu.reciprocal %404 : vector<1x96xf32> -> vector<1x96xf32>
      %406 = arith.mulf %395, %405 : vector<1x96xf32>
      %407 = arith.mulf %396, %405 : vector<1x96xf32>
      %408 = arith.mulf %406, %392 : vector<1x96xf32>
      %409 = arith.addf %407, %408 : vector<1x96xf32>
      %cst_133 = arith.constant 0.000000e+00 : f32
      %410 = vector.broadcast %cst_133 : f32 to vector<1x96xf32>
      %411 = arith.subf %410, %406 : vector<1x96xf32>
      %412 = vector.extract_strided_slice %380 {offsets = [2, 0], sizes = [1, 96], strides = [1, 1]} : vector<16x96xf32> to vector<1x96xf32>
      %413 = vector.extract_strided_slice %383 {offsets = [2, 0], sizes = [1, 96], strides = [1, 1]} : vector<16x96xf32> to vector<1x96xf32>
      %cst_134 = arith.constant 2.000000e+00 : f32
      %414 = vector.broadcast %cst_134 : f32 to vector<1x96xf32>
      %415 = arith.mulf %414, %412 : vector<1x96xf32>
      %cst_135 = arith.constant 1.000000e+00 : f32
      %416 = vector.broadcast %cst_135 : f32 to vector<1x96xf32>
      %417 = arith.addf %416, %415 : vector<1x96xf32>
      %418 = arith.mulf %412, %411 : vector<1x96xf32>
      %419 = arith.addf %417, %418 : vector<1x96xf32>
      %cst_136 = arith.constant 9.99999997E-7 : f32
      %420 = vector.broadcast %cst_136 : f32 to vector<1x96xf32>
      %421 = arith.addf %419, %420 : vector<1x96xf32>
      %422 = tpu.reciprocal %421 : vector<1x96xf32> -> vector<1x96xf32>
      %423 = arith.mulf %412, %422 : vector<1x96xf32>
      %424 = arith.mulf %413, %422 : vector<1x96xf32>
      %425 = arith.mulf %423, %409 : vector<1x96xf32>
      %426 = arith.addf %424, %425 : vector<1x96xf32>
      %cst_137 = arith.constant 0.000000e+00 : f32
      %427 = vector.broadcast %cst_137 : f32 to vector<1x96xf32>
      %428 = arith.subf %427, %423 : vector<1x96xf32>
      %429 = vector.extract_strided_slice %380 {offsets = [3, 0], sizes = [1, 96], strides = [1, 1]} : vector<16x96xf32> to vector<1x96xf32>
      %430 = vector.extract_strided_slice %383 {offsets = [3, 0], sizes = [1, 96], strides = [1, 1]} : vector<16x96xf32> to vector<1x96xf32>
      %cst_138 = arith.constant 2.000000e+00 : f32
      %431 = vector.broadcast %cst_138 : f32 to vector<1x96xf32>
      %432 = arith.mulf %431, %429 : vector<1x96xf32>
      %cst_139 = arith.constant 1.000000e+00 : f32
      %433 = vector.broadcast %cst_139 : f32 to vector<1x96xf32>
      %434 = arith.addf %433, %432 : vector<1x96xf32>
      %435 = arith.mulf %429, %428 : vector<1x96xf32>
      %436 = arith.addf %434, %435 : vector<1x96xf32>
      %cst_140 = arith.constant 9.99999997E-7 : f32
      %437 = vector.broadcast %cst_140 : f32 to vector<1x96xf32>
      %438 = arith.addf %436, %437 : vector<1x96xf32>
      %439 = tpu.reciprocal %438 : vector<1x96xf32> -> vector<1x96xf32>
      %440 = arith.mulf %429, %439 : vector<1x96xf32>
      %441 = arith.mulf %430, %439 : vector<1x96xf32>
      %442 = arith.mulf %440, %426 : vector<1x96xf32>
      %443 = arith.addf %441, %442 : vector<1x96xf32>
      %cst_141 = arith.constant 0.000000e+00 : f32
      %444 = vector.broadcast %cst_141 : f32 to vector<1x96xf32>
      %445 = arith.subf %444, %440 : vector<1x96xf32>
      %446 = vector.extract_strided_slice %380 {offsets = [4, 0], sizes = [1, 96], strides = [1, 1]} : vector<16x96xf32> to vector<1x96xf32>
      %447 = vector.extract_strided_slice %383 {offsets = [4, 0], sizes = [1, 96], strides = [1, 1]} : vector<16x96xf32> to vector<1x96xf32>
      %cst_142 = arith.constant 2.000000e+00 : f32
      %448 = vector.broadcast %cst_142 : f32 to vector<1x96xf32>
      %449 = arith.mulf %448, %446 : vector<1x96xf32>
      %cst_143 = arith.constant 1.000000e+00 : f32
      %450 = vector.broadcast %cst_143 : f32 to vector<1x96xf32>
      %451 = arith.addf %450, %449 : vector<1x96xf32>
      %452 = arith.mulf %446, %445 : vector<1x96xf32>
      %453 = arith.addf %451, %452 : vector<1x96xf32>
      %cst_144 = arith.constant 9.99999997E-7 : f32
      %454 = vector.broadcast %cst_144 : f32 to vector<1x96xf32>
      %455 = arith.addf %453, %454 : vector<1x96xf32>
      %456 = tpu.reciprocal %455 : vector<1x96xf32> -> vector<1x96xf32>
      %457 = arith.mulf %446, %456 : vector<1x96xf32>
      %458 = arith.mulf %447, %456 : vector<1x96xf32>
      %459 = arith.mulf %457, %443 : vector<1x96xf32>
      %460 = arith.addf %458, %459 : vector<1x96xf32>
      %cst_145 = arith.constant 0.000000e+00 : f32
      %461 = vector.broadcast %cst_145 : f32 to vector<1x96xf32>
      %462 = arith.subf %461, %457 : vector<1x96xf32>
      %463 = vector.extract_strided_slice %380 {offsets = [5, 0], sizes = [1, 96], strides = [1, 1]} : vector<16x96xf32> to vector<1x96xf32>
      %464 = vector.extract_strided_slice %383 {offsets = [5, 0], sizes = [1, 96], strides = [1, 1]} : vector<16x96xf32> to vector<1x96xf32>
      %cst_146 = arith.constant 2.000000e+00 : f32
      %465 = vector.broadcast %cst_146 : f32 to vector<1x96xf32>
      %466 = arith.mulf %465, %463 : vector<1x96xf32>
      %cst_147 = arith.constant 1.000000e+00 : f32
      %467 = vector.broadcast %cst_147 : f32 to vector<1x96xf32>
      %468 = arith.addf %467, %466 : vector<1x96xf32>
      %469 = arith.mulf %463, %462 : vector<1x96xf32>
      %470 = arith.addf %468, %469 : vector<1x96xf32>
      %cst_148 = arith.constant 9.99999997E-7 : f32
      %471 = vector.broadcast %cst_148 : f32 to vector<1x96xf32>
      %472 = arith.addf %470, %471 : vector<1x96xf32>
      %473 = tpu.reciprocal %472 : vector<1x96xf32> -> vector<1x96xf32>
      %474 = arith.mulf %463, %473 : vector<1x96xf32>
      %475 = arith.mulf %464, %473 : vector<1x96xf32>
      %476 = arith.mulf %474, %460 : vector<1x96xf32>
      %477 = arith.addf %475, %476 : vector<1x96xf32>
      %cst_149 = arith.constant 0.000000e+00 : f32
      %478 = vector.broadcast %cst_149 : f32 to vector<1x96xf32>
      %479 = arith.subf %478, %474 : vector<1x96xf32>
      %480 = vector.extract_strided_slice %380 {offsets = [6, 0], sizes = [1, 96], strides = [1, 1]} : vector<16x96xf32> to vector<1x96xf32>
      %481 = vector.extract_strided_slice %383 {offsets = [6, 0], sizes = [1, 96], strides = [1, 1]} : vector<16x96xf32> to vector<1x96xf32>
      %cst_150 = arith.constant 2.000000e+00 : f32
      %482 = vector.broadcast %cst_150 : f32 to vector<1x96xf32>
      %483 = arith.mulf %482, %480 : vector<1x96xf32>
      %cst_151 = arith.constant 1.000000e+00 : f32
      %484 = vector.broadcast %cst_151 : f32 to vector<1x96xf32>
      %485 = arith.addf %484, %483 : vector<1x96xf32>
      %486 = arith.mulf %480, %479 : vector<1x96xf32>
      %487 = arith.addf %485, %486 : vector<1x96xf32>
      %cst_152 = arith.constant 9.99999997E-7 : f32
      %488 = vector.broadcast %cst_152 : f32 to vector<1x96xf32>
      %489 = arith.addf %487, %488 : vector<1x96xf32>
      %490 = tpu.reciprocal %489 : vector<1x96xf32> -> vector<1x96xf32>
      %491 = arith.mulf %480, %490 : vector<1x96xf32>
      %492 = arith.mulf %481, %490 : vector<1x96xf32>
      %493 = arith.mulf %491, %477 : vector<1x96xf32>
      %494 = arith.addf %492, %493 : vector<1x96xf32>
      %cst_153 = arith.constant 0.000000e+00 : f32
      %495 = vector.broadcast %cst_153 : f32 to vector<1x96xf32>
      %496 = arith.subf %495, %491 : vector<1x96xf32>
      %497 = vector.extract_strided_slice %380 {offsets = [7, 0], sizes = [1, 96], strides = [1, 1]} : vector<16x96xf32> to vector<1x96xf32>
      %498 = vector.extract_strided_slice %383 {offsets = [7, 0], sizes = [1, 96], strides = [1, 1]} : vector<16x96xf32> to vector<1x96xf32>
      %cst_154 = arith.constant 2.000000e+00 : f32
      %499 = vector.broadcast %cst_154 : f32 to vector<1x96xf32>
      %500 = arith.mulf %499, %497 : vector<1x96xf32>
      %cst_155 = arith.constant 1.000000e+00 : f32
      %501 = vector.broadcast %cst_155 : f32 to vector<1x96xf32>
      %502 = arith.addf %501, %500 : vector<1x96xf32>
      %503 = arith.mulf %497, %496 : vector<1x96xf32>
      %504 = arith.addf %502, %503 : vector<1x96xf32>
      %cst_156 = arith.constant 9.99999997E-7 : f32
      %505 = vector.broadcast %cst_156 : f32 to vector<1x96xf32>
      %506 = arith.addf %504, %505 : vector<1x96xf32>
      %507 = tpu.reciprocal %506 : vector<1x96xf32> -> vector<1x96xf32>
      %508 = arith.mulf %497, %507 : vector<1x96xf32>
      %509 = arith.mulf %498, %507 : vector<1x96xf32>
      %510 = arith.mulf %508, %494 : vector<1x96xf32>
      %511 = arith.addf %509, %510 : vector<1x96xf32>
      %cst_157 = arith.constant 0.000000e+00 : f32
      %512 = vector.broadcast %cst_157 : f32 to vector<1x96xf32>
      %513 = arith.subf %512, %508 : vector<1x96xf32>
      %514 = vector.extract_strided_slice %380 {offsets = [8, 0], sizes = [1, 96], strides = [1, 1]} : vector<16x96xf32> to vector<1x96xf32>
      %515 = vector.extract_strided_slice %383 {offsets = [8, 0], sizes = [1, 96], strides = [1, 1]} : vector<16x96xf32> to vector<1x96xf32>
      %cst_158 = arith.constant 2.000000e+00 : f32
      %516 = vector.broadcast %cst_158 : f32 to vector<1x96xf32>
      %517 = arith.mulf %516, %514 : vector<1x96xf32>
      %cst_159 = arith.constant 1.000000e+00 : f32
      %518 = vector.broadcast %cst_159 : f32 to vector<1x96xf32>
      %519 = arith.addf %518, %517 : vector<1x96xf32>
      %520 = arith.mulf %514, %513 : vector<1x96xf32>
      %521 = arith.addf %519, %520 : vector<1x96xf32>
      %cst_160 = arith.constant 9.99999997E-7 : f32
      %522 = vector.broadcast %cst_160 : f32 to vector<1x96xf32>
      %523 = arith.addf %521, %522 : vector<1x96xf32>
      %524 = tpu.reciprocal %523 : vector<1x96xf32> -> vector<1x96xf32>
      %525 = arith.mulf %514, %524 : vector<1x96xf32>
      %526 = arith.mulf %515, %524 : vector<1x96xf32>
      %527 = arith.mulf %525, %511 : vector<1x96xf32>
      %528 = arith.addf %526, %527 : vector<1x96xf32>
      %cst_161 = arith.constant 0.000000e+00 : f32
      %529 = vector.broadcast %cst_161 : f32 to vector<1x96xf32>
      %530 = arith.subf %529, %525 : vector<1x96xf32>
      %531 = vector.extract_strided_slice %380 {offsets = [9, 0], sizes = [1, 96], strides = [1, 1]} : vector<16x96xf32> to vector<1x96xf32>
      %532 = vector.extract_strided_slice %383 {offsets = [9, 0], sizes = [1, 96], strides = [1, 1]} : vector<16x96xf32> to vector<1x96xf32>
      %cst_162 = arith.constant 2.000000e+00 : f32
      %533 = vector.broadcast %cst_162 : f32 to vector<1x96xf32>
      %534 = arith.mulf %533, %531 : vector<1x96xf32>
      %cst_163 = arith.constant 1.000000e+00 : f32
      %535 = vector.broadcast %cst_163 : f32 to vector<1x96xf32>
      %536 = arith.addf %535, %534 : vector<1x96xf32>
      %537 = arith.mulf %531, %530 : vector<1x96xf32>
      %538 = arith.addf %536, %537 : vector<1x96xf32>
      %cst_164 = arith.constant 9.99999997E-7 : f32
      %539 = vector.broadcast %cst_164 : f32 to vector<1x96xf32>
      %540 = arith.addf %538, %539 : vector<1x96xf32>
      %541 = tpu.reciprocal %540 : vector<1x96xf32> -> vector<1x96xf32>
      %542 = arith.mulf %531, %541 : vector<1x96xf32>
      %543 = arith.mulf %532, %541 : vector<1x96xf32>
      %544 = arith.mulf %542, %528 : vector<1x96xf32>
      %545 = arith.addf %543, %544 : vector<1x96xf32>
      %cst_165 = arith.constant 0.000000e+00 : f32
      %546 = vector.broadcast %cst_165 : f32 to vector<1x96xf32>
      %547 = arith.subf %546, %542 : vector<1x96xf32>
      %548 = vector.extract_strided_slice %380 {offsets = [10, 0], sizes = [1, 96], strides = [1, 1]} : vector<16x96xf32> to vector<1x96xf32>
      %549 = vector.extract_strided_slice %383 {offsets = [10, 0], sizes = [1, 96], strides = [1, 1]} : vector<16x96xf32> to vector<1x96xf32>
      %cst_166 = arith.constant 2.000000e+00 : f32
      %550 = vector.broadcast %cst_166 : f32 to vector<1x96xf32>
      %551 = arith.mulf %550, %548 : vector<1x96xf32>
      %cst_167 = arith.constant 1.000000e+00 : f32
      %552 = vector.broadcast %cst_167 : f32 to vector<1x96xf32>
      %553 = arith.addf %552, %551 : vector<1x96xf32>
      %554 = arith.mulf %548, %547 : vector<1x96xf32>
      %555 = arith.addf %553, %554 : vector<1x96xf32>
      %cst_168 = arith.constant 9.99999997E-7 : f32
      %556 = vector.broadcast %cst_168 : f32 to vector<1x96xf32>
      %557 = arith.addf %555, %556 : vector<1x96xf32>
      %558 = tpu.reciprocal %557 : vector<1x96xf32> -> vector<1x96xf32>
      %559 = arith.mulf %548, %558 : vector<1x96xf32>
      %560 = arith.mulf %549, %558 : vector<1x96xf32>
      %561 = arith.mulf %559, %545 : vector<1x96xf32>
      %562 = arith.addf %560, %561 : vector<1x96xf32>
      %cst_169 = arith.constant 0.000000e+00 : f32
      %563 = vector.broadcast %cst_169 : f32 to vector<1x96xf32>
      %564 = arith.subf %563, %559 : vector<1x96xf32>
      %565 = vector.extract_strided_slice %380 {offsets = [11, 0], sizes = [1, 96], strides = [1, 1]} : vector<16x96xf32> to vector<1x96xf32>
      %566 = vector.extract_strided_slice %383 {offsets = [11, 0], sizes = [1, 96], strides = [1, 1]} : vector<16x96xf32> to vector<1x96xf32>
      %cst_170 = arith.constant 2.000000e+00 : f32
      %567 = vector.broadcast %cst_170 : f32 to vector<1x96xf32>
      %568 = arith.mulf %567, %565 : vector<1x96xf32>
      %cst_171 = arith.constant 1.000000e+00 : f32
      %569 = vector.broadcast %cst_171 : f32 to vector<1x96xf32>
      %570 = arith.addf %569, %568 : vector<1x96xf32>
      %571 = arith.mulf %565, %564 : vector<1x96xf32>
      %572 = arith.addf %570, %571 : vector<1x96xf32>
      %cst_172 = arith.constant 9.99999997E-7 : f32
      %573 = vector.broadcast %cst_172 : f32 to vector<1x96xf32>
      %574 = arith.addf %572, %573 : vector<1x96xf32>
      %575 = tpu.reciprocal %574 : vector<1x96xf32> -> vector<1x96xf32>
      %576 = arith.mulf %565, %575 : vector<1x96xf32>
      %577 = arith.mulf %566, %575 : vector<1x96xf32>
      %578 = arith.mulf %576, %562 : vector<1x96xf32>
      %579 = arith.addf %577, %578 : vector<1x96xf32>
      %cst_173 = arith.constant 0.000000e+00 : f32
      %580 = vector.broadcast %cst_173 : f32 to vector<1x96xf32>
      %581 = arith.subf %580, %576 : vector<1x96xf32>
      %582 = vector.extract_strided_slice %380 {offsets = [12, 0], sizes = [1, 96], strides = [1, 1]} : vector<16x96xf32> to vector<1x96xf32>
      %583 = vector.extract_strided_slice %383 {offsets = [12, 0], sizes = [1, 96], strides = [1, 1]} : vector<16x96xf32> to vector<1x96xf32>
      %cst_174 = arith.constant 2.000000e+00 : f32
      %584 = vector.broadcast %cst_174 : f32 to vector<1x96xf32>
      %585 = arith.mulf %584, %582 : vector<1x96xf32>
      %cst_175 = arith.constant 1.000000e+00 : f32
      %586 = vector.broadcast %cst_175 : f32 to vector<1x96xf32>
      %587 = arith.addf %586, %585 : vector<1x96xf32>
      %588 = arith.mulf %582, %581 : vector<1x96xf32>
      %589 = arith.addf %587, %588 : vector<1x96xf32>
      %cst_176 = arith.constant 9.99999997E-7 : f32
      %590 = vector.broadcast %cst_176 : f32 to vector<1x96xf32>
      %591 = arith.addf %589, %590 : vector<1x96xf32>
      %592 = tpu.reciprocal %591 : vector<1x96xf32> -> vector<1x96xf32>
      %593 = arith.mulf %582, %592 : vector<1x96xf32>
      %594 = arith.mulf %583, %592 : vector<1x96xf32>
      %595 = arith.mulf %593, %579 : vector<1x96xf32>
      %596 = arith.addf %594, %595 : vector<1x96xf32>
      %cst_177 = arith.constant 0.000000e+00 : f32
      %597 = vector.broadcast %cst_177 : f32 to vector<1x96xf32>
      %598 = arith.subf %597, %593 : vector<1x96xf32>
      %599 = vector.extract_strided_slice %380 {offsets = [13, 0], sizes = [1, 96], strides = [1, 1]} : vector<16x96xf32> to vector<1x96xf32>
      %600 = vector.extract_strided_slice %383 {offsets = [13, 0], sizes = [1, 96], strides = [1, 1]} : vector<16x96xf32> to vector<1x96xf32>
      %cst_178 = arith.constant 2.000000e+00 : f32
      %601 = vector.broadcast %cst_178 : f32 to vector<1x96xf32>
      %602 = arith.mulf %601, %599 : vector<1x96xf32>
      %cst_179 = arith.constant 1.000000e+00 : f32
      %603 = vector.broadcast %cst_179 : f32 to vector<1x96xf32>
      %604 = arith.addf %603, %602 : vector<1x96xf32>
      %605 = arith.mulf %599, %598 : vector<1x96xf32>
      %606 = arith.addf %604, %605 : vector<1x96xf32>
      %cst_180 = arith.constant 9.99999997E-7 : f32
      %607 = vector.broadcast %cst_180 : f32 to vector<1x96xf32>
      %608 = arith.addf %606, %607 : vector<1x96xf32>
      %609 = tpu.reciprocal %608 : vector<1x96xf32> -> vector<1x96xf32>
      %610 = arith.mulf %599, %609 : vector<1x96xf32>
      %611 = arith.mulf %600, %609 : vector<1x96xf32>
      %612 = arith.mulf %610, %596 : vector<1x96xf32>
      %613 = arith.addf %611, %612 : vector<1x96xf32>
      %cst_181 = arith.constant 0.000000e+00 : f32
      %614 = vector.broadcast %cst_181 : f32 to vector<1x96xf32>
      %615 = arith.subf %614, %610 : vector<1x96xf32>
      %616 = vector.extract_strided_slice %380 {offsets = [14, 0], sizes = [1, 96], strides = [1, 1]} : vector<16x96xf32> to vector<1x96xf32>
      %617 = vector.extract_strided_slice %383 {offsets = [14, 0], sizes = [1, 96], strides = [1, 1]} : vector<16x96xf32> to vector<1x96xf32>
      %cst_182 = arith.constant 2.000000e+00 : f32
      %618 = vector.broadcast %cst_182 : f32 to vector<1x96xf32>
      %619 = arith.mulf %618, %616 : vector<1x96xf32>
      %cst_183 = arith.constant 1.000000e+00 : f32
      %620 = vector.broadcast %cst_183 : f32 to vector<1x96xf32>
      %621 = arith.addf %620, %619 : vector<1x96xf32>
      %622 = arith.mulf %616, %615 : vector<1x96xf32>
      %623 = arith.addf %621, %622 : vector<1x96xf32>
      %cst_184 = arith.constant 9.99999997E-7 : f32
      %624 = vector.broadcast %cst_184 : f32 to vector<1x96xf32>
      %625 = arith.addf %623, %624 : vector<1x96xf32>
      %626 = tpu.reciprocal %625 : vector<1x96xf32> -> vector<1x96xf32>
      %627 = arith.mulf %616, %626 : vector<1x96xf32>
      %628 = arith.mulf %617, %626 : vector<1x96xf32>
      %629 = arith.mulf %627, %613 : vector<1x96xf32>
      %630 = arith.addf %628, %629 : vector<1x96xf32>
      %cst_185 = arith.constant 0.000000e+00 : f32
      %631 = vector.broadcast %cst_185 : f32 to vector<1x96xf32>
      %632 = arith.subf %631, %627 : vector<1x96xf32>
      %633 = vector.extract_strided_slice %380 {offsets = [15, 0], sizes = [1, 96], strides = [1, 1]} : vector<16x96xf32> to vector<1x96xf32>
      %634 = vector.extract_strided_slice %383 {offsets = [15, 0], sizes = [1, 96], strides = [1, 1]} : vector<16x96xf32> to vector<1x96xf32>
      %cst_186 = arith.constant 1.000000e+00 : f32
      %635 = vector.broadcast %cst_186 : f32 to vector<1x96xf32>
      %636 = arith.addf %635, %633 : vector<1x96xf32>
      %637 = arith.mulf %633, %632 : vector<1x96xf32>
      %638 = arith.addf %636, %637 : vector<1x96xf32>
      %cst_187 = arith.constant 9.99999997E-7 : f32
      %639 = vector.broadcast %cst_187 : f32 to vector<1x96xf32>
      %640 = arith.addf %638, %639 : vector<1x96xf32>
      %641 = tpu.reciprocal %640 : vector<1x96xf32> -> vector<1x96xf32>
      %642 = arith.mulf %633, %641 : vector<1x96xf32>
      %643 = arith.mulf %634, %641 : vector<1x96xf32>
      %644 = arith.mulf %642, %630 : vector<1x96xf32>
      %645 = arith.addf %643, %644 : vector<1x96xf32>
      %c15_188 = arith.constant 15 : index
      %c0_189 = arith.constant 0 : index
      %646 = vector.load %arg7[%c15_188, %c0_189] : memref<16x96xf32, #tpu.memory_space<vmem>>, vector<1x96xf32>
      tpu.vector_store %arg7[%c15_188, %c0_189], %645 {strides = array<i32>} : memref<16x96xf32, #tpu.memory_space<vmem>>, vector<1x96xf32>,
      %647 = arith.mulf %632, %645 : vector<1x96xf32>
      %648 = arith.subf %630, %647 : vector<1x96xf32>
      %c14_190 = arith.constant 14 : index
      %c0_191 = arith.constant 0 : index
      %649 = vector.load %arg7[%c14_190, %c0_191] : memref<16x96xf32, #tpu.memory_space<vmem>>, vector<1x96xf32>
      tpu.vector_store %arg7[%c14_190, %c0_191], %648 {strides = array<i32>} : memref<16x96xf32, #tpu.memory_space<vmem>>, vector<1x96xf32>,
      %650 = arith.mulf %615, %648 : vector<1x96xf32>
      %651 = arith.subf %613, %650 : vector<1x96xf32>
      %c13_192 = arith.constant 13 : index
      %c0_193 = arith.constant 0 : index
      %652 = vector.load %arg7[%c13_192, %c0_193] : memref<16x96xf32, #tpu.memory_space<vmem>>, vector<1x96xf32>
      tpu.vector_store %arg7[%c13_192, %c0_193], %651 {strides = array<i32>} : memref<16x96xf32, #tpu.memory_space<vmem>>, vector<1x96xf32>,
      %653 = arith.mulf %598, %651 : vector<1x96xf32>
      %654 = arith.subf %596, %653 : vector<1x96xf32>
      %c12_194 = arith.constant 12 : index
      %c0_195 = arith.constant 0 : index
      %655 = vector.load %arg7[%c12_194, %c0_195] : memref<16x96xf32, #tpu.memory_space<vmem>>, vector<1x96xf32>
      tpu.vector_store %arg7[%c12_194, %c0_195], %654 {strides = array<i32>} : memref<16x96xf32, #tpu.memory_space<vmem>>, vector<1x96xf32>,
      %656 = arith.mulf %581, %654 : vector<1x96xf32>
      %657 = arith.subf %579, %656 : vector<1x96xf32>
      %c11_196 = arith.constant 11 : index
      %c0_197 = arith.constant 0 : index
      %658 = vector.load %arg7[%c11_196, %c0_197] : memref<16x96xf32, #tpu.memory_space<vmem>>, vector<1x96xf32>
      tpu.vector_store %arg7[%c11_196, %c0_197], %657 {strides = array<i32>} : memref<16x96xf32, #tpu.memory_space<vmem>>, vector<1x96xf32>,
      %659 = arith.mulf %564, %657 : vector<1x96xf32>
      %660 = arith.subf %562, %659 : vector<1x96xf32>
      %c10_198 = arith.constant 10 : index
      %c0_199 = arith.constant 0 : index
      %661 = vector.load %arg7[%c10_198, %c0_199] : memref<16x96xf32, #tpu.memory_space<vmem>>, vector<1x96xf32>
      tpu.vector_store %arg7[%c10_198, %c0_199], %660 {strides = array<i32>} : memref<16x96xf32, #tpu.memory_space<vmem>>, vector<1x96xf32>,
      %662 = arith.mulf %547, %660 : vector<1x96xf32>
      %663 = arith.subf %545, %662 : vector<1x96xf32>
      %c9_200 = arith.constant 9 : index
      %c0_201 = arith.constant 0 : index
      %664 = vector.load %arg7[%c9_200, %c0_201] : memref<16x96xf32, #tpu.memory_space<vmem>>, vector<1x96xf32>
      tpu.vector_store %arg7[%c9_200, %c0_201], %663 {strides = array<i32>} : memref<16x96xf32, #tpu.memory_space<vmem>>, vector<1x96xf32>,
      %665 = arith.mulf %530, %663 : vector<1x96xf32>
      %666 = arith.subf %528, %665 : vector<1x96xf32>
      %c8_202 = arith.constant 8 : index
      %c0_203 = arith.constant 0 : index
      %667 = vector.load %arg7[%c8_202, %c0_203] : memref<16x96xf32, #tpu.memory_space<vmem>>, vector<1x96xf32>
      tpu.vector_store %arg7[%c8_202, %c0_203], %666 {strides = array<i32>} : memref<16x96xf32, #tpu.memory_space<vmem>>, vector<1x96xf32>,
      %668 = arith.mulf %513, %666 : vector<1x96xf32>
      %669 = arith.subf %511, %668 : vector<1x96xf32>
      %c7_204 = arith.constant 7 : index
      %c0_205 = arith.constant 0 : index
      %670 = vector.load %arg7[%c7_204, %c0_205] : memref<16x96xf32, #tpu.memory_space<vmem>>, vector<1x96xf32>
      tpu.vector_store %arg7[%c7_204, %c0_205], %669 {strides = array<i32>} : memref<16x96xf32, #tpu.memory_space<vmem>>, vector<1x96xf32>,
      %671 = arith.mulf %496, %669 : vector<1x96xf32>
      %672 = arith.subf %494, %671 : vector<1x96xf32>
      %c6_206 = arith.constant 6 : index
      %c0_207 = arith.constant 0 : index
      %673 = vector.load %arg7[%c6_206, %c0_207] : memref<16x96xf32, #tpu.memory_space<vmem>>, vector<1x96xf32>
      tpu.vector_store %arg7[%c6_206, %c0_207], %672 {strides = array<i32>} : memref<16x96xf32, #tpu.memory_space<vmem>>, vector<1x96xf32>,
      %674 = arith.mulf %479, %672 : vector<1x96xf32>
      %675 = arith.subf %477, %674 : vector<1x96xf32>
      %c5_208 = arith.constant 5 : index
      %c0_209 = arith.constant 0 : index
      %676 = vector.load %arg7[%c5_208, %c0_209] : memref<16x96xf32, #tpu.memory_space<vmem>>, vector<1x96xf32>
      tpu.vector_store %arg7[%c5_208, %c0_209], %675 {strides = array<i32>} : memref<16x96xf32, #tpu.memory_space<vmem>>, vector<1x96xf32>,
      %677 = arith.mulf %462, %675 : vector<1x96xf32>
      %678 = arith.subf %460, %677 : vector<1x96xf32>
      %c4_210 = arith.constant 4 : index
      %c0_211 = arith.constant 0 : index
      %679 = vector.load %arg7[%c4_210, %c0_211] : memref<16x96xf32, #tpu.memory_space<vmem>>, vector<1x96xf32>
      tpu.vector_store %arg7[%c4_210, %c0_211], %678 {strides = array<i32>} : memref<16x96xf32, #tpu.memory_space<vmem>>, vector<1x96xf32>,
      %680 = arith.mulf %445, %678 : vector<1x96xf32>
      %681 = arith.subf %443, %680 : vector<1x96xf32>
      %c3_212 = arith.constant 3 : index
      %c0_213 = arith.constant 0 : index
      %682 = vector.load %arg7[%c3_212, %c0_213] : memref<16x96xf32, #tpu.memory_space<vmem>>, vector<1x96xf32>
      tpu.vector_store %arg7[%c3_212, %c0_213], %681 {strides = array<i32>} : memref<16x96xf32, #tpu.memory_space<vmem>>, vector<1x96xf32>,
      %683 = arith.mulf %428, %681 : vector<1x96xf32>
      %684 = arith.subf %426, %683 : vector<1x96xf32>
      %c2_214 = arith.constant 2 : index
      %c0_215 = arith.constant 0 : index
      %685 = vector.load %arg7[%c2_214, %c0_215] : memref<16x96xf32, #tpu.memory_space<vmem>>, vector<1x96xf32>
      tpu.vector_store %arg7[%c2_214, %c0_215], %684 {strides = array<i32>} : memref<16x96xf32, #tpu.memory_space<vmem>>, vector<1x96xf32>,
      %686 = arith.mulf %411, %684 : vector<1x96xf32>
      %687 = arith.subf %409, %686 : vector<1x96xf32>
      %c1_216 = arith.constant 1 : index
      %c0_217 = arith.constant 0 : index
      %688 = vector.load %arg7[%c1_216, %c0_217] : memref<16x96xf32, #tpu.memory_space<vmem>>, vector<1x96xf32>
      tpu.vector_store %arg7[%c1_216, %c0_217], %687 {strides = array<i32>} : memref<16x96xf32, #tpu.memory_space<vmem>>, vector<1x96xf32>,
      %689 = arith.mulf %394, %687 : vector<1x96xf32>
      %690 = arith.subf %392, %689 : vector<1x96xf32>
      %c0_218 = arith.constant 0 : index
      %c0_219 = arith.constant 0 : index
      %691 = vector.load %arg7[%c0_218, %c0_219] : memref<16x96xf32, #tpu.memory_space<vmem>>, vector<1x96xf32>
      tpu.vector_store %arg7[%c0_218, %c0_219], %690 {strides = array<i32>} : memref<16x96xf32, #tpu.memory_space<vmem>>, vector<1x96xf32>,
      %c0_220 = arith.constant 0 : index
      %c0_221 = arith.constant 0 : index
      %692 = vector.load %arg7[%c0_220, %c0_221] : memref<16x96xf32, #tpu.memory_space<vmem>>, vector<16x96xf32>
      %693 = tpu.transpose %692, [1, 0] : vector<16x96xf32> -> vector<96x16xf32>
      %694 = vector.shape_cast %693 : vector<96x16xf32> to vector<2x3x16x16xf32>
      %695 = tpu.transpose %694, [0, 1, 3, 2] : vector<2x3x16x16xf32> -> vector<2x3x16x16xf32>
      %c0_222 = arith.constant 0 : index
      %c0_223 = arith.constant 0 : index
      %c0_224 = arith.constant 0 : index
      %c0_225 = arith.constant 0 : index
      %696 = vector.load %arg6[%c0_222, %c0_223, %c0_224, %c0_225] : memref<2x3x16x16xf32, #tpu.memory_space<vmem>>, vector<2x3x16x16xf32>
      tpu.vector_store %arg6[%c0_222, %c0_223, %c0_224, %c0_225], %695 {strides = array<i32>} : memref<2x3x16x16xf32, #tpu.memory_space<vmem>>, vector<2x3x16x16xf32>,
    }
    %c10_i32_31 = arith.constant 10 : i32
    return
  }
}

</mosaic_0001>

<llo_original>
// kernel: tpu_custom_call.1
$region0: #{tpu_custom_call.1}
  #allocation0 [shape = 'u32[]', space=smem, size = 0x4, offset = 0x4, fixed_abs, tag = 'smem constant byte address 0x4 - core index']
  #allocation1 [shape = 'u32[144,128]{1,0:T(1,128)}', space=vmem, size = 0x12000, scoped, tag = 'internal scratch']
  #allocation2 [shape = 'f32[16,96]{1,0:T(8,128)}', space=vmem, size = 0x2000, scoped, tag = 'scratch operand']
  %s0 = inlined_call_operand.hbm [shape: f32[3,3], index: 0, kind: input, shape index: {}]
  %s1 = inlined_call_operand.hbm [shape: f32[2,3,16,16], index: 1, kind: input, shape index: {}]
  %s2 = inlined_call_operand.hbm [shape: f32[16,96], index: 2, kind: input, shape index: {}]
  %s3 = inlined_call_operand.hbm [shape: f32[16,96], index: 3, kind: input, shape index: {}]
  %s4 = inlined_call_operand.hbm [shape: f32[16,96], index: 4, kind: input, shape index: {}]
  %s5 = inlined_call_operand.vmem [shape: f32[16,96], index: 5, kind: input, shape index: {}]
  %s6 = inlined_call_operand.hbm [shape: f32[2,3,16,16], index: 6, kind: output, shape index: {}]
  %s7 = sld [smem:[#allocation0]]
  $region61: #{tpu_custom_call.1} parent=0
    _
  %s9 = ssub.s32 1, %s7
  %s10 = scalar_select 0, %s9, %s7
  $region1: #{tpu_custom_call.1} parent=0
    #allocation3 [shape = 'u8[2048]{0}', space=smem, size = 0x800, scoped, tag = 'input window, operand 0, single buffered']
    #allocation4 [shape = 's32[1]{0}', space=sflag, size = 0x4, scoped, tag = 'scoped memory for tpu_custom_call.1']
    #allocation5 [shape = 's32[1]{0}', space=sflag, size = 0x4, scoped, tag = 'scoped memory for tpu_custom_call.1']
    #allocation6 [shape = 's32[1]{0}', space=sflag, size = 0x4, scoped, tag = 'scoped memory for tpu_custom_call.1']
    #allocation7 [shape = 'u8[49152]{0}', space=vmem, size = 0xc000, scoped, tag = 'input window, operand 1, single buffered']
    #allocation8 [shape = 'u8[8192]{0}', space=vmem, size = 0x2000, scoped, tag = 'input window, operand 2, single buffered']
    #allocation9 [shape = 's32[1]{0}', space=sflag, size = 0x4, scoped, tag = 'scoped memory for tpu_custom_call.1']
    #allocation10 [shape = 'u8[8192]{0}', space=vmem, size = 0x2000, scoped, tag = 'input window, operand 3, single buffered']
    #allocation11 [shape = 'u8[8192]{0}', space=vmem, size = 0x2000, scoped, tag = 'input window, operand 4, single buffered']
    #allocation12 [shape = 's32[1]{0}', space=sflag, size = 0x4, scoped, tag = 'scoped memory for tpu_custom_call.1']
    #allocation13 [shape = 'u8[49152]{0}', space=vmem, size = 0xc000, scoped, tag = 'output window, operand 0, single buffered']
    %11 = vsyncpa [#allocation6], 0
    %12 = vsyncpa [#allocation4], 0
    %13 = vsyncpa [#allocation9], 0
    %14 = vsyncpa [#allocation12], 0
    %15 = vsyncpa [#allocation5], 0
    // Predicated region
    $region2: #{tpu_custom_call.1} parent=1 // pred_check
      _
    $region3: #{tpu_custom_call.1} parent=1 // pred_check_branch
      %17 = sbr.rel (0) target = $region5
    $region4: #{tpu_custom_call.1} parent=1 // pred_region
      %s19 = ssub.s32 64, 64
      %20 = vsyncadd [#allocation6], %s19
      %23 = dma.hbm_to_smem %s0, 64, [#allocation3], [#allocation6]
    $region5: #{tpu_custom_call.1} parent=1 // pred_fallthru
      _
    // Predicated region
    $region6: #{tpu_custom_call.1} parent=1 // pred_check
      _
    $region7: #{tpu_custom_call.1} parent=1 // pred_check_branch
      %25 = sbr.rel (0) target = $region9
    $region8: #{tpu_custom_call.1} parent=1 // pred_region
      %s27 = ssub.s32 1536, 1536
      %28 = vsyncadd [#allocation4], %s27
      %s29 = sshll.u32 [#allocation7], 4
      %s30 = int_to_ptr.vmem [resolvable:$true] %s29
      %35 = dma.hbm_to_vmem [thread:$0]  %s1, 1536, %s30, [#allocation4], 128, 128, 8
    $region9: #{tpu_custom_call.1} parent=1 // pred_fallthru
      _
    // Predicated region
    $region10: #{tpu_custom_call.1} parent=1 // pred_check
      _
    $region11: #{tpu_custom_call.1} parent=1 // pred_check_branch
      %37 = sbr.rel (0) target = $region13
    $region12: #{tpu_custom_call.1} parent=1 // pred_region
      %s39 = ssub.s32 256, 256
      %40 = vsyncadd [#allocation9], %s39
      %s41 = sshll.u32 [#allocation8], 4
      %s42 = int_to_ptr.vmem [resolvable:$true] %s41
      %47 = dma.hbm_to_vmem [thread:$0]  %s2, 256, %s42, [#allocation9], 128, 128, 8
    $region13: #{tpu_custom_call.1} parent=1 // pred_fallthru
      _
    // Predicated region
    $region14: #{tpu_custom_call.1} parent=1 // pred_check
      _
    $region15: #{tpu_custom_call.1} parent=1 // pred_check_branch
      %49 = sbr.rel (0) target = $region17
    $region16: #{tpu_custom_call.1} parent=1 // pred_region
      %s51 = ssub.s32 256, 256
      %52 = vsyncadd [#allocation9], %s51
      %s53 = sshll.u32 [#allocation10], 4
      %s54 = int_to_ptr.vmem [resolvable:$true] %s53
      %59 = dma.hbm_to_vmem [thread:$0]  %s3, 256, %s54, [#allocation9], 128, 128, 8
    $region17: #{tpu_custom_call.1} parent=1 // pred_fallthru
      _
    // Predicated region
    $region18: #{tpu_custom_call.1} parent=1 // pred_check
      _
    $region19: #{tpu_custom_call.1} parent=1 // pred_check_branch
      %61 = sbr.rel (0) target = $region21
    $region20: #{tpu_custom_call.1} parent=1 // pred_region
      %s63 = ssub.s32 256, 256
      %64 = vsyncadd [#allocation12], %s63
      %s65 = sshll.u32 [#allocation11], 4
      %s66 = int_to_ptr.vmem [resolvable:$true] %s65
      %71 = dma.hbm_to_vmem [thread:$0]  %s4, 256, %s66, [#allocation12], 128, 128, 8
    $region21: #{tpu_custom_call.1} parent=1 // pred_fallthru
      _
    // Predicated region
    $region22: #{tpu_custom_call.1} parent=1 // pred_check
      _
    $region23: #{tpu_custom_call.1} parent=1 // pred_check_branch
      %73 = sbr.rel (0) target = $region25
    $region24: #{tpu_custom_call.1} parent=1 // pred_region
      _
    $region25: #{tpu_custom_call.1} parent=1 // pred_fallthru
      _
    // Predicated region
    $region26: #{tpu_custom_call.1} parent=1 // pred_check
      _
    $region27: #{tpu_custom_call.1} parent=1 // pred_check_branch
      %75 = sbr.rel (0) target = $region29
    $region28: #{tpu_custom_call.1} parent=1 // pred_region
      %76 = dma.done [#allocation6], 64
    $region29: #{tpu_custom_call.1} parent=1 // pred_fallthru
      _
    // Predicated region
    $region30: #{tpu_custom_call.1} parent=1 // pred_check
      _
    $region31: #{tpu_custom_call.1} parent=1 // pred_check_branch
      %78 = sbr.rel (0) target = $region33
    $region32: #{tpu_custom_call.1} parent=1 // pred_region
      %79 = dma.done [#allocation4], 1536
    $region33: #{tpu_custom_call.1} parent=1 // pred_fallthru
      _
    // Predicated region
    $region34: #{tpu_custom_call.1} parent=1 // pred_check
      _
    $region35: #{tpu_custom_call.1} parent=1 // pred_check_branch
      %81 = sbr.rel (0) target = $region37
    $region36: #{tpu_custom_call.1} parent=1 // pred_region
      %82 = dma.done [#allocation9], 256
    $region37: #{tpu_custom_call.1} parent=1 // pred_fallthru
      _
    // Predicated region
    $region38: #{tpu_custom_call.1} parent=1 // pred_check
      _
    $region39: #{tpu_custom_call.1} parent=1 // pred_check_branch
      %84 = sbr.rel (0) target = $region41
    $region40: #{tpu_custom_call.1} parent=1 // pred_region
      %85 = dma.done [#allocation9], 256
    $region41: #{tpu_custom_call.1} parent=1 // pred_fallthru
      _
    // Predicated region
    $region42: #{tpu_custom_call.1} parent=1 // pred_check
      _
    $region43: #{tpu_custom_call.1} parent=1 // pred_check_branch
      %87 = sbr.rel (0) target = $region45
    $region44: #{tpu_custom_call.1} parent=1 // pred_region
      %88 = dma.done [#allocation12], 256
    $region45: #{tpu_custom_call.1} parent=1 // pred_fallthru
      _
    %89 = sfence
    %s90 = sld [smem:[#allocation3]]
    %s91 = sld [smem:[#allocation3 + $0x1]]
    %s92 = sld [smem:[#allocation3 + $0x2]]
    %s93 = sld [smem:[#allocation3 + $0x80]]
    %s94 = sld [smem:[#allocation3 + $0x81]]
    %s95 = sld [smem:[#allocation3 + $0x82]]
    %s96 = sld [smem:[#allocation3 + $0x100]]
    %s97 = sld [smem:[#allocation3 + $0x101]]
    %s98 = sld [smem:[#allocation3 + $0x102]]
    %v99 = vld [vmem:[#allocation8] sm:$0xff]
    %v100 = vld [vmem:[#allocation8 + $0x8] sm:$0xff]
    %v101 = vld [vmem:[#allocation10] sm:$0xff]
    %v102 = vld [vmem:[#allocation10 + $0x8] sm:$0xff]
    %v103 = vld [vmem:[#allocation11] sm:$0xff]
    %v104 = vld [vmem:[#allocation11 + $0x8] sm:$0xff]
    %v105 = vld [vmem:[%s5] sm:$0xff]
    %v106 = vld [vmem:[%s5 + $0x8] sm:$0xff]
    %v107 = vld [vmem:[#allocation7] sm:$0xff]
    %v108 = vld [vmem:[#allocation7 + $0x8] sm:$0xff]
    %v109 = vld [vmem:[#allocation7 + $0x10] sm:$0xff]
    %v110 = vld [vmem:[#allocation7 + $0x18] sm:$0xff]
    %v111 = vld [vmem:[#allocation7 + $0x20] sm:$0xff]
    %v112 = vld [vmem:[#allocation7 + $0x28] sm:$0xff]
    %v113 = vld [vmem:[#allocation7 + $0x30] sm:$0xff]
    %v114 = vld [vmem:[#allocation7 + $0x38] sm:$0xff]
    %v115 = vld [vmem:[#allocation7 + $0x40] sm:$0xff]
    %v116 = vld [vmem:[#allocation7 + $0x48] sm:$0xff]
    %v117 = vld [vmem:[#allocation7 + $0x50] sm:$0xff]
    %v118 = vld [vmem:[#allocation7 + $0x58] sm:$0xff]
    %vm119 = vcmask 130048
    %120 = vst.msk [vmem:[#allocation13] sm:$0xff] %vm119, %v107
    %121 = vst.msk [vmem:[#allocation13 + $0x8] sm:$0xff] %vm119, %v108
    %122 = vst.msk [vmem:[#allocation13 + $0x10] sm:$0xff] %vm119, %v109
    %123 = vst.msk [vmem:[#allocation13 + $0x18] sm:$0xff] %vm119, %v110
    %124 = vst.msk [vmem:[#allocation13 + $0x20] sm:$0xff] %vm119, %v111
    %125 = vst.msk [vmem:[#allocation13 + $0x28] sm:$0xff] %vm119, %v112
    %126 = vst.msk [vmem:[#allocation13 + $0x30] sm:$0xff] %vm119, %v113
    %127 = vst.msk [vmem:[#allocation13 + $0x38] sm:$0xff] %vm119, %v114
    %128 = vst.msk [vmem:[#allocation13 + $0x40] sm:$0xff] %vm119, %v115
    %129 = vst.msk [vmem:[#allocation13 + $0x48] sm:$0xff] %vm119, %v116
    %130 = vst.msk [vmem:[#allocation13 + $0x50] sm:$0xff] %vm119, %v117
    %131 = vst.msk [vmem:[#allocation13 + $0x58] sm:$0xff] %vm119, %v118
    loop: start=0, step=1, limit=10
    $region46: #{tpu_custom_call.1} parent=1 // loop_pre_header
      _
    $region47: #{tpu_custom_call.1} parent=1 // loop_header
      %s133 = sphi 0, %s137
      %p134 = scmp.ge.s32.totalorder %s133, 10
    $region48: #{tpu_custom_call.1} parent=1 // loop_header_branch
      %136 = sbr.rel (%p134) target = $region52
    $region49: #{tpu_custom_call.1} parent=1 // loop_body
      %s138 = scvt.s32.f32 %s133
      %s139 = smul.f32 %s138, 0.001
      %v140 = vld [vmem:[#allocation13] sm:$0xff]
      %v141 = vld [vmem:[#allocation13 + $0x8] sm:$0xff]
      %v142 = vld [vmem:[#allocation13 + $0x10] sm:$0xff]
      %v143 = vld [vmem:[#allocation13 + $0x18] sm:$0xff]
      %v144 = vld [vmem:[#allocation13 + $0x20] sm:$0xff]
      %v145 = vld [vmem:[#allocation13 + $0x28] sm:$0xff]
      %v146 = vld [vmem:[#allocation13 + $0x30] sm:$0xff]
      %v147 = vld [vmem:[#allocation13 + $0x38] sm:$0xff]
      %v148 = vld [vmem:[#allocation13 + $0x40] sm:$0xff]
      %v149 = vld [vmem:[#allocation13 + $0x48] sm:$0xff]
      %v150 = vld [vmem:[#allocation13 + $0x50] sm:$0xff]
      %v151 = vld [vmem:[#allocation13 + $0x58] sm:$0xff]
      %v152 = vstv %s90
      %v153 = vmul.f32 %v152, %v140
      %v154 = vmul.f32 %v152, %v141
      %v155 = vmul.f32 %v152, %v146
      %v156 = vmul.f32 %v152, %v147
      %v157 = vstv %s91
      %v158 = vmul.f32 %v157, %v142
      %v159 = vmul.f32 %v157, %v143
      %v160 = vmul.f32 %v157, %v148
      %v161 = vmul.f32 %v157, %v149
      %v162 = vadd.f32 %v153, %v158
      %v163 = vadd.f32 %v154, %v159
      %v164 = vadd.f32 %v155, %v160
      %v165 = vadd.f32 %v156, %v161
      %v166 = vstv %s92
      %v167 = vmul.f32 %v166, %v144
      %v168 = vmul.f32 %v166, %v145
      %v169 = vmul.f32 %v166, %v150
      %v170 = vmul.f32 %v166, %v151
      %v171 = vadd.f32 %v162, %v167
      %v172 = vadd.f32 %v163, %v168
      %v173 = vadd.f32 %v164, %v169
      %v174 = vadd.f32 %v165, %v170
      %v175 = vstv %s93
      %v176 = vmul.f32 %v175, %v140
      %v177 = vmul.f32 %v175, %v141
      %v178 = vmul.f32 %v175, %v146
      %v179 = vmul.f32 %v175, %v147
      %v180 = vstv %s94
      %v181 = vmul.f32 %v180, %v142
      %v182 = vmul.f32 %v180, %v143
      %v183 = vmul.f32 %v180, %v148
      %v184 = vmul.f32 %v180, %v149
      %v185 = vadd.f32 %v176, %v181
      %v186 = vadd.f32 %v177, %v182
      %v187 = vadd.f32 %v178, %v183
      %v188 = vadd.f32 %v179, %v184
      %v189 = vstv %s95
      %v190 = vmul.f32 %v189, %v144
      %v191 = vmul.f32 %v189, %v145
      %v192 = vmul.f32 %v189, %v150
      %v193 = vmul.f32 %v189, %v151
      %v194 = vadd.f32 %v185, %v190
      %v195 = vadd.f32 %v186, %v191
      %v196 = vadd.f32 %v187, %v192
      %v197 = vadd.f32 %v188, %v193
      %v198 = vstv %s96
      %v199 = vmul.f32 %v198, %v140
      %v200 = vmul.f32 %v198, %v141
      %v201 = vmul.f32 %v198, %v146
      %v202 = vmul.f32 %v198, %v147
      %v203 = vstv %s97
      %v204 = vmul.f32 %v203, %v142
      %v205 = vmul.f32 %v203, %v143
      %v206 = vmul.f32 %v203, %v148
      %v207 = vmul.f32 %v203, %v149
      %v208 = vadd.f32 %v199, %v204
      %v209 = vadd.f32 %v200, %v205
      %v210 = vadd.f32 %v201, %v206
      %v211 = vadd.f32 %v202, %v207
      %v212 = vstv %s98
      %v213 = vmul.f32 %v212, %v144
      %v214 = vmul.f32 %v212, %v145
      %v215 = vmul.f32 %v212, %v150
      %v216 = vmul.f32 %v212, %v151
      %v217 = vadd.f32 %v208, %v213
      %v218 = vadd.f32 %v209, %v214
      %v219 = vadd.f32 %v210, %v215
      %v220 = vadd.f32 %v211, %v216
      %v221 = vstv %s139
      %v222 = vmul.f32 %v101, %v221
      %v223 = vmul.f32 %v102, %v221
      %v224 = vadd.f32 %v99, %v222
      %v225 = vadd.f32 %v100, %v223
      %v226 = vmax.f32 %v224, 1e-06
      %v227 = vmax.f32 %v225, 1e-06
      %v228 = vmin.f32 %v226, 10.0
      %v229 = vmin.f32 %v227, 10.0
      %v230 = vmul.f32 %v228, 0.0005
      %v231 = vmul.f32 %v229, 0.0005
      %232 = vxpose.xlu0.b32.start [1/16] %v171, 128
      %233 = vxpose.xlu0.b32.cont [2/16] %v172, 128
      %234 = vxpose.xlu0.b32.cont [3/16] %v194, 128
      %235 = vxpose.xlu0.b32.cont [4/16] %v195, 128
      %236 = vxpose.xlu0.b32.cont [5/16] %v217, 128
      %237 = vxpose.xlu0.b32.cont [6/16] %v218, 128
      %238 = vxpose.xlu0.b32.cont [7/16] %v173, 128
      %239 = vxpose.xlu0.b32.cont [8/16] %v174, 128
      %240 = vxpose.xlu0.b32.cont [9/16] %v196, 128
      %241 = vxpose.xlu0.b32.cont [10/16] %v197, 128
      %242 = vxpose.xlu0.b32.cont [11/16] %v219, 128
      %243 = vxpose.xlu0.b32.cont [12/16] %v220, 128
      %244 = vxpose.xlu0.b32.cont [13/16] 0.0, 128
      %245 = vxpose.xlu0.b32.cont [14/16] 0.0, 128
      %246 = vxpose.xlu0.b32.cont [15/16] 0.0, 128
      %247 = vxpose.xlu0.b32.end [16/16] 0.0, 128
      %v248 = vpop.trf.xlu0
      %v249 = vpop.trf.xlu0
      %v250 = vpop.trf.xlu0
      %v251 = vpop.trf.xlu0
      %v252 = vpop.trf.xlu0
      %v253 = vpop.trf.xlu0
      %v254 = vpop.trf.xlu0
      %v255 = vpop.trf.xlu0
      %v256 = vpop.trf.xlu0
      %v257 = vpop.trf.xlu0
      %v258 = vpop.trf.xlu0
      %v259 = vpop.trf.xlu0
      %v260 = vpop.trf.xlu0
      %v261 = vpop.trf.xlu0
      %v262 = vpop.trf.xlu0
      %v263 = vpop.trf.xlu0
      %v264 = vadd.f32 %v230, 1.0
      %v265 = vadd.f32 %v264, 1e-06
      %v266 = vrcp.pop %v265
      %v267 = vmul.f32 %v230, %v266
      %v268 = vmul.f32 %v248, %v266
      %v269 = vsub.f32 0.0, %v267
      %v270 = vmul.f32 %v230, 2.0
      %v271 = vadd.f32 %v270, 1.0
      %v273 = vrot.slane %v269, 7
      %v275 = vmul.f32 %v230, %v273
      %v276 = vadd.f32 %v271, %v275
      %v277 = vadd.f32 %v276, 1e-06
      %v278 = vrcp.pop %v277
      %v279 = vmul.f32 %v230, %v278
      %v280 = vmul.f32 %v248, %v278
      %v282 = vrot.slane %v268, 7
      %v284 = vmul.f32 %v279, %v282
      %v285 = vadd.f32 %v280, %v284
      %v286 = vsub.f32 0.0, %v279
      %v288 = vrot.slane %v286, 7
      %v290 = vmul.f32 %v230, %v288
      %v291 = vadd.f32 %v271, %v290
      %v292 = vadd.f32 %v291, 1e-06
      %v293 = vrcp.pop %v292
      %v294 = vmul.f32 %v230, %v293
      %v295 = vmul.f32 %v248, %v293
      %v297 = vrot.slane %v285, 7
      %v299 = vmul.f32 %v294, %v297
      %v300 = vadd.f32 %v295, %v299
      %v301 = vsub.f32 0.0, %v294
      %v303 = vrot.slane %v301, 7
      %v305 = vmul.f32 %v230, %v303
      %v306 = vadd.f32 %v271, %v305
      %v307 = vadd.f32 %v306, 1e-06
      %v308 = vrcp.pop %v307
      %v309 = vmul.f32 %v230, %v308
      %v310 = vmul.f32 %v248, %v308
      %v312 = vrot.slane %v300, 7
      %v314 = vmul.f32 %v309, %v312
      %v315 = vadd.f32 %v310, %v314
      %v316 = vsub.f32 0.0, %v309
      %v318 = vrot.slane %v316, 7
      %v320 = vmul.f32 %v230, %v318
      %v321 = vadd.f32 %v271, %v320
      %v322 = vadd.f32 %v321, 1e-06
      %v323 = vrcp.pop %v322
      %v324 = vmul.f32 %v230, %v323
      %v325 = vmul.f32 %v248, %v323
      %v327 = vrot.slane %v315, 7
      %v329 = vmul.f32 %v324, %v327
      %v330 = vadd.f32 %v325, %v329
      %v331 = vsub.f32 0.0, %v324
      %v333 = vrot.slane %v331, 7
      %v335 = vmul.f32 %v230, %v333
      %v336 = vadd.f32 %v271, %v335
      %v337 = vadd.f32 %v336, 1e-06
      %v338 = vrcp.pop %v337
      %v339 = vmul.f32 %v230, %v338
      %v340 = vmul.f32 %v248, %v338
      %v342 = vrot.slane %v330, 7
      %v344 = vmul.f32 %v339, %v342
      %v345 = vadd.f32 %v340, %v344
      %v346 = vsub.f32 0.0, %v339
      %v348 = vrot.slane %v346, 7
      %v350 = vmul.f32 %v230, %v348
      %v351 = vadd.f32 %v271, %v350
      %v352 = vadd.f32 %v351, 1e-06
      %v353 = vrcp.pop %v352
      %v354 = vmul.f32 %v230, %v353
      %v355 = vmul.f32 %v248, %v353
      %v357 = vrot.slane %v345, 7
      %v359 = vmul.f32 %v354, %v357
      %v360 = vadd.f32 %v355, %v359
      %v361 = vsub.f32 0.0, %v354
      %v363 = vrot.slane %v361, 7
      %v365 = vmul.f32 %v230, %v363
      %v366 = vadd.f32 %v271, %v365
      %v367 = vadd.f32 %v366, 1e-06
      %v368 = vrcp.pop %v367
      %v369 = vmul.f32 %v230, %v368
      %v370 = vmul.f32 %v248, %v368
      %v372 = vrot.slane %v360, 7
      %v374 = vmul.f32 %v369, %v372
      %v375 = vadd.f32 %v370, %v374
      %v376 = vsub.f32 0.0, %v369
      %v377 = vmul.f32 %v231, 2.0
      %v378 = vadd.f32 %v377, 1.0
      %v380 = vrot.slane %v376, 7
      %v382 = vmul.f32 %v231, %v380
      %v383 = vadd.f32 %v378, %v382
      %v384 = vadd.f32 %v383, 1e-06
      %v385 = vrcp.pop %v384
      %v386 = vmul.f32 %v231, %v385
      %v387 = vmul.f32 %v249, %v385
      %v389 = vrot.slane %v375, 7
      %v391 = vmul.f32 %v386, %v389
      %v392 = vadd.f32 %v387, %v391
      %v393 = vsub.f32 0.0, %v386
      %v395 = vrot.slane %v393, 7
      %v397 = vmul.f32 %v231, %v395
      %v398 = vadd.f32 %v378, %v397
      %v399 = vadd.f32 %v398, 1e-06
      %v400 = vrcp.pop %v399
      %v401 = vmul.f32 %v231, %v400
      %v402 = vmul.f32 %v249, %v400
      %v404 = vrot.slane %v392, 7
      %v406 = vmul.f32 %v401, %v404
      %v407 = vadd.f32 %v402, %v406
      %v408 = vsub.f32 0.0, %v401
      %v410 = vrot.slane %v408, 7
      %v412 = vmul.f32 %v231, %v410
      %v413 = vadd.f32 %v378, %v412
      %v414 = vadd.f32 %v413, 1e-06
      %v415 = vrcp.pop %v414
      %v416 = vmul.f32 %v231, %v415
      %v417 = vmul.f32 %v249, %v415
      %v419 = vrot.slane %v407, 7
      %v421 = vmul.f32 %v416, %v419
      %v422 = vadd.f32 %v417, %v421
      %v423 = vsub.f32 0.0, %v416
      %v425 = vrot.slane %v423, 7
      %v427 = vmul.f32 %v231, %v425
      %v428 = vadd.f32 %v378, %v427
      %v429 = vadd.f32 %v428, 1e-06
      %v430 = vrcp.pop %v429
      %v431 = vmul.f32 %v231, %v430
      %v432 = vmul.f32 %v249, %v430
      %v434 = vrot.slane %v422, 7
      %v436 = vmul.f32 %v431, %v434
      %v437 = vadd.f32 %v432, %v436
      %v438 = vsub.f32 0.0, %v431
      %v440 = vrot.slane %v438, 7
      %v442 = vmul.f32 %v231, %v440
      %v443 = vadd.f32 %v378, %v442
      %v444 = vadd.f32 %v443, 1e-06
      %v445 = vrcp.pop %v444
      %v446 = vmul.f32 %v231, %v445
      %v447 = vmul.f32 %v249, %v445
      %v449 = vrot.slane %v437, 7
      %v451 = vmul.f32 %v446, %v449
      %v452 = vadd.f32 %v447, %v451
      %v453 = vsub.f32 0.0, %v446
      %v455 = vrot.slane %v453, 7
      %v457 = vmul.f32 %v231, %v455
      %v458 = vadd.f32 %v378, %v457
      %v459 = vadd.f32 %v458, 1e-06
      %v460 = vrcp.pop %v459
      %v461 = vmul.f32 %v231, %v460
      %v462 = vmul.f32 %v249, %v460
      %v464 = vrot.slane %v452, 7
      %v466 = vmul.f32 %v461, %v464
      %v467 = vadd.f32 %v462, %v466
      %v468 = vsub.f32 0.0, %v461
      %v470 = vrot.slane %v468, 7
      %v472 = vmul.f32 %v231, %v470
      %v473 = vadd.f32 %v378, %v472
      %v474 = vadd.f32 %v473, 1e-06
      %v475 = vrcp.pop %v474
      %v476 = vmul.f32 %v231, %v475
      %v477 = vmul.f32 %v249, %v475
      %v479 = vrot.slane %v467, 7
      %v481 = vmul.f32 %v476, %v479
      %v482 = vadd.f32 %v477, %v481
      %v483 = vsub.f32 0.0, %v476
      %v484 = vadd.f32 %v231, 1.0
      %v486 = vrot.slane %v483, 7
      %v488 = vmul.f32 %v231, %v486
      %v489 = vadd.f32 %v484, %v488
      %v490 = vadd.f32 %v489, 1e-06
      %v491 = vrcp.pop %v490
      %v492 = vmul.f32 %v231, %v491
      %v493 = vmul.f32 %v249, %v491
      %v495 = vrot.slane %v482, 7
      %v497 = vmul.f32 %v492, %v495
      %v498 = vadd.f32 %v493, %v497
      %vm499 = vcmask 785415
      %500 = vst.msk [vmem:[#allocation2 + $0x8] sm:$0x80] %vm499, %v498
      %v502 = vrot.slane %v498, 1
      %v504 = vmul.f32 %v483, %v502
      %v505 = vsub.f32 %v482, %v504
      %vm506 = vcmask 784390
      %507 = vst.msk [vmem:[#allocation2 + $0x8] sm:$0x40] %vm506, %v505
      %v509 = vrot.slane %v505, 1
      %v511 = vmul.f32 %v468, %v509
      %v512 = vsub.f32 %v467, %v511
      %vm513 = vcmask 783365
      %514 = vst.msk [vmem:[#allocation2 + $0x8] sm:$0x20] %vm513, %v512
      %v516 = vrot.slane %v512, 1
      %v518 = vmul.f32 %v453, %v516
      %v519 = vsub.f32 %v452, %v518
      %vm520 = vcmask 782340
      %521 = vst.msk [vmem:[#allocation2 + $0x8] sm:$0x10] %vm520, %v519
      %v523 = vrot.slane %v519, 1
      %v525 = vmul.f32 %v438, %v523
      %v526 = vsub.f32 %v437, %v525
      %vm527 = vcmask 781315
      %528 = vst.msk [vmem:[#allocation2 + $0x8] sm:$0x8] %vm527, %v526
      %v530 = vrot.slane %v526, 1
      %v532 = vmul.f32 %v423, %v530
      %v533 = vsub.f32 %v422, %v532
      %vm534 = vcmask 780290
      %535 = vst.msk [vmem:[#allocation2 + $0x8] sm:$0x4] %vm534, %v533
      %v537 = vrot.slane %v533, 1
      %v539 = vmul.f32 %v408, %v537
      %v540 = vsub.f32 %v407, %v539
      %vm541 = vcmask 779265
      %542 = vst.msk [vmem:[#allocation2 + $0x8] sm:$0x2] %vm541, %v540
      %v544 = vrot.slane %v540, 1
      %v546 = vmul.f32 %v393, %v544
      %v547 = vsub.f32 %v392, %v546
      %vm548 = vcmask 778240
      %549 = vst.msk [vmem:[#allocation2 + $0x8] sm:$0x1] %vm548, %v547
      %v551 = vrot.slane %v547, 1
      %v553 = vmul.f32 %v376, %v551
      %v554 = vsub.f32 %v375, %v553
      %555 = vst.msk [vmem:[#allocation2] sm:$0x80] %vm499, %v554
      %v557 = vrot.slane %v554, 1
      %v559 = vmul.f32 %v361, %v557
      %v560 = vsub.f32 %v360, %v559
      %561 = vst.msk [vmem:[#allocation2] sm:$0x40] %vm506, %v560
      %v563 = vrot.slane %v560, 1
      %v565 = vmul.f32 %v346, %v563
      %v566 = vsub.f32 %v345, %v565
      %567 = vst.msk [vmem:[#allocation2] sm:$0x20] %vm513, %v566
      %v569 = vrot.slane %v566, 1
      %v571 = vmul.f32 %v331, %v569
      %v572 = vsub.f32 %v330, %v571
      %573 = vst.msk [vmem:[#allocation2] sm:$0x10] %vm520, %v572
      %v575 = vrot.slane %v572, 1
      %v577 = vmul.f32 %v316, %v575
      %v578 = vsub.f32 %v315, %v577
      %579 = vst.msk [vmem:[#allocation2] sm:$0x8] %vm527, %v578
      %v581 = vrot.slane %v578, 1
      %v583 = vmul.f32 %v301, %v581
      %v584 = vsub.f32 %v300, %v583
      %585 = vst.msk [vmem:[#allocation2] sm:$0x4] %vm534, %v584
      %v587 = vrot.slane %v584, 1
      %v589 = vmul.f32 %v286, %v587
      %v590 = vsub.f32 %v285, %v589
      %591 = vst.msk [vmem:[#allocation2] sm:$0x2] %vm541, %v590
      %v593 = vrot.slane %v590, 1
      %v595 = vmul.f32 %v269, %v593
      %v596 = vsub.f32 %v268, %v595
      %597 = vst.msk [vmem:[#allocation2] sm:$0x1] %vm548, %v596
      %v598 = vld [vmem:[#allocation2] sm:$0xff]
      %v599 = vld [vmem:[#allocation2 + $0x8] sm:$0xff]
      %600 = vxpose.xlu0.b32.start [1/16] %v598, 128
      %601 = vxpose.xlu0.b32.cont [2/16] %v599, 128
      %602 = vxpose.xlu0.b32.cont [3/16] 0.0, 128
      %603 = vxpose.xlu0.b32.cont [4/16] 0.0, 128
      %604 = vxpose.xlu0.b32.cont [5/16] 0.0, 128
      %605 = vxpose.xlu0.b32.cont [6/16] 0.0, 128
      %606 = vxpose.xlu0.b32.cont [7/16] 0.0, 128
      %607 = vxpose.xlu0.b32.cont [8/16] 0.0, 128
      %608 = vxpose.xlu0.b32.cont [9/16] 0.0, 128
      %609 = vxpose.xlu0.b32.cont [10/16] 0.0, 128
      %610 = vxpose.xlu0.b32.cont [11/16] 0.0, 128
      %611 = vxpose.xlu0.b32.cont [12/16] 0.0, 128
      %612 = vxpose.xlu0.b32.cont [13/16] 0.0, 128
      %613 = vxpose.xlu0.b32.cont [14/16] 0.0, 128
      %614 = vxpose.xlu0.b32.cont [15/16] 0.0, 128
      %615 = vxpose.xlu0.b32.end [16/16] 0.0, 128
      %v616 = vpop.trf.xlu0
      %v617 = vpop.trf.xlu0
      %v618 = vpop.trf.xlu0
      %v619 = vpop.trf.xlu0
      %v620 = vpop.trf.xlu0
      %v621 = vpop.trf.xlu0
      %v622 = vpop.trf.xlu0
      %v623 = vpop.trf.xlu0
      %v624 = vpop.trf.xlu0
      %v625 = vpop.trf.xlu0
      %v626 = vpop.trf.xlu0
      %v627 = vpop.trf.xlu0
      %v628 = vpop.trf.xlu0
      %v629 = vpop.trf.xlu0
      %v630 = vpop.trf.xlu0
      %v631 = vpop.trf.xlu0
      %s632 = sadd.f32 %s139, 0.0005
      %v633 = vstv %s632
      %v634 = vmul.f32 %v105, %v633
      %v635 = vmul.f32 %v106, %v633
      %v636 = vadd.f32 %v103, %v634
      %v637 = vadd.f32 %v104, %v635
      %v638 = vmax.f32 %v636, 1e-06
      %v639 = vmax.f32 %v637, 1e-06
      %v640 = vmin.f32 %v638, 10.0
      %v641 = vmin.f32 %v639, 10.0
      %v642 = vmul.f32 %v640, 0.0005
      %v643 = vmul.f32 %v641, 0.0005
      %644 = vxpose.xlu0.b32.start [1/16] %v616, 128
      %645 = vxpose.xlu0.b32.cont [2/16] %v617, 128
      %646 = vxpose.xlu0.b32.cont [3/16] 0.0, 128
      %647 = vxpose.xlu0.b32.cont [4/16] 0.0, 128
      %648 = vxpose.xlu0.b32.cont [5/16] 0.0, 128
      %649 = vxpose.xlu0.b32.cont [6/16] 0.0, 128
      %650 = vxpose.xlu0.b32.cont [7/16] 0.0, 128
      %651 = vxpose.xlu0.b32.cont [8/16] 0.0, 128
      %652 = vxpose.xlu0.b32.cont [9/16] 0.0, 128
      %653 = vxpose.xlu0.b32.cont [10/16] 0.0, 128
      %654 = vxpose.xlu0.b32.cont [11/16] 0.0, 128
      %655 = vxpose.xlu0.b32.cont [12/16] 0.0, 128
      %656 = vxpose.xlu0.b32.cont [13/16] 0.0, 128
      %657 = vxpose.xlu0.b32.cont [14/16] 0.0, 128
      %658 = vxpose.xlu0.b32.cont [15/16] 0.0, 128
      %659 = vxpose.xlu0.b32.end [16/16] 0.0, 128
      %v660 = vpop.trf.xlu0
      %v661 = vpop.trf.xlu0
      %v662 = vpop.trf.xlu0
      %v663 = vpop.trf.xlu0
      %v664 = vpop.trf.xlu0
      %v665 = vpop.trf.xlu0
      %v666 = vpop.trf.xlu0
      %v667 = vpop.trf.xlu0
      %v668 = vpop.trf.xlu0
      %v669 = vpop.trf.xlu0
      %v670 = vpop.trf.xlu0
      %v671 = vpop.trf.xlu0
      %v672 = vpop.trf.xlu0
      %v673 = vpop.trf.xlu0
      %v674 = vpop.trf.xlu0
      %v675 = vpop.trf.xlu0
      %676 = vxpose.xlu0.b32.start [1/16] %v618, 128
      %677 = vxpose.xlu0.b32.cont [2/16] %v619, 128
      %678 = vxpose.xlu0.b32.cont [3/16] 0.0, 128
      %679 = vxpose.xlu0.b32.cont [4/16] 0.0, 128
      %680 = vxpose.xlu0.b32.cont [5/16] 0.0, 128
      %681 = vxpose.xlu0.b32.cont [6/16] 0.0, 128
      %682 = vxpose.xlu0.b32.cont [7/16] 0.0, 128
      %683 = vxpose.xlu0.b32.cont [8/16] 0.0, 128
      %684 = vxpose.xlu0.b32.cont [9/16] 0.0, 128
      %685 = vxpose.xlu0.b32.cont [10/16] 0.0, 128
      %686 = vxpose.xlu0.b32.cont [11/16] 0.0, 128
      %687 = vxpose.xlu0.b32.cont [12/16] 0.0, 128
      %688 = vxpose.xlu0.b32.cont [13/16] 0.0, 128
      %689 = vxpose.xlu0.b32.cont [14/16] 0.0, 128
      %690 = vxpose.xlu0.b32.cont [15/16] 0.0, 128
      %691 = vxpose.xlu0.b32.end [16/16] 0.0, 128
      %v692 = vpop.trf.xlu0
      %v693 = vpop.trf.xlu0
      %v694 = vpop.trf.xlu0
      %v695 = vpop.trf.xlu0
      %v696 = vpop.trf.xlu0
      %v697 = vpop.trf.xlu0
      %v698 = vpop.trf.xlu0
      %v699 = vpop.trf.xlu0
      %v700 = vpop.trf.xlu0
      %v701 = vpop.trf.xlu0
      %v702 = vpop.trf.xlu0
      %v703 = vpop.trf.xlu0
      %v704 = vpop.trf.xlu0
      %v705 = vpop.trf.xlu0
      %v706 = vpop.trf.xlu0
      %v707 = vpop.trf.xlu0
      %708 = vxpose.xlu0.b32.start [1/16] %v620, 128
      %709 = vxpose.xlu0.b32.cont [2/16] %v621, 128
      %710 = vxpose.xlu0.b32.cont [3/16] 0.0, 128
      %711 = vxpose.xlu0.b32.cont [4/16] 0.0, 128
      %712 = vxpose.xlu0.b32.cont [5/16] 0.0, 128
      %713 = vxpose.xlu0.b32.cont [6/16] 0.0, 128
      %714 = vxpose.xlu0.b32.cont [7/16] 0.0, 128
      %715 = vxpose.xlu0.b32.cont [8/16] 0.0, 128
      %716 = vxpose.xlu0.b32.cont [9/16] 0.0, 128
      %717 = vxpose.xlu0.b32.cont [10/16] 0.0, 128
      %718 = vxpose.xlu0.b32.cont [11/16] 0.0, 128
      %719 = vxpose.xlu0.b32.cont [12/16] 0.0, 128
      %720 = vxpose.xlu0.b32.cont [13/16] 0.0, 128
      %721 = vxpose.xlu0.b32.cont [14/16] 0.0, 128
      %722 = vxpose.xlu0.b32.cont [15/16] 0.0, 128
      %723 = vxpose.xlu0.b32.end [16/16] 0.0, 128
      %v724 = vpop.trf.xlu0
      %v725 = vpop.trf.xlu0
      %v726 = vpop.trf.xlu0
      %v727 = vpop.trf.xlu0
      %v728 = vpop.trf.xlu0
      %v729 = vpop.trf.xlu0
      %v730 = vpop.trf.xlu0
      %v731 = vpop.trf.xlu0
      %v732 = vpop.trf.xlu0
      %v733 = vpop.trf.xlu0
      %v734 = vpop.trf.xlu0
      %v735 = vpop.trf.xlu0
      %v736 = vpop.trf.xlu0
      %v737 = vpop.trf.xlu0
      %v738 = vpop.trf.xlu0
      %v739 = vpop.trf.xlu0
      %740 = vxpose.xlu0.b32.start [1/16] %v622, 128
      %741 = vxpose.xlu0.b32.cont [2/16] %v623, 128
      %742 = vxpose.xlu0.b32.cont [3/16] 0.0, 128
      %743 = vxpose.xlu0.b32.cont [4/16] 0.0, 128
      %744 = vxpose.xlu0.b32.cont [5/16] 0.0, 128
      %745 = vxpose.xlu0.b32.cont [6/16] 0.0, 128
      %746 = vxpose.xlu0.b32.cont [7/16] 0.0, 128
      %747 = vxpose.xlu0.b32.cont [8/16] 0.0, 128
      %748 = vxpose.xlu0.b32.cont [9/16] 0.0, 128
      %749 = vxpose.xlu0.b32.cont [10/16] 0.0, 128
      %750 = vxpose.xlu0.b32.cont [11/16] 0.0, 128
      %751 = vxpose.xlu0.b32.cont [12/16] 0.0, 128
      %752 = vxpose.xlu0.b32.cont [13/16] 0.0, 128
      %753 = vxpose.xlu0.b32.cont [14/16] 0.0, 128
      %754 = vxpose.xlu0.b32.cont [15/16] 0.0, 128
      %755 = vxpose.xlu0.b32.end [16/16] 0.0, 128
      %v756 = vpop.trf.xlu0
      %v757 = vpop.trf.xlu0
      %v758 = vpop.trf.xlu0
      %v759 = vpop.trf.xlu0
      %v760 = vpop.trf.xlu0
      %v761 = vpop.trf.xlu0
      %v762 = vpop.trf.xlu0
      %v763 = vpop.trf.xlu0
      %v764 = vpop.trf.xlu0
      %v765 = vpop.trf.xlu0
      %v766 = vpop.trf.xlu0
      %v767 = vpop.trf.xlu0
      %v768 = vpop.trf.xlu0
      %v769 = vpop.trf.xlu0
      %v770 = vpop.trf.xlu0
      %v771 = vpop.trf.xlu0
      %772 = vxpose.xlu0.b32.start [1/16] %v624, 128
      %773 = vxpose.xlu0.b32.cont [2/16] %v625, 128
      %774 = vxpose.xlu0.b32.cont [3/16] 0.0, 128
      %775 = vxpose.xlu0.b32.cont [4/16] 0.0, 128
      %776 = vxpose.xlu0.b32.cont [5/16] 0.0, 128
      %777 = vxpose.xlu0.b32.cont [6/16] 0.0, 128
      %778 = vxpose.xlu0.b32.cont [7/16] 0.0, 128
      %779 = vxpose.xlu0.b32.cont [8/16] 0.0, 128
      %780 = vxpose.xlu0.b32.cont [9/16] 0.0, 128
      %781 = vxpose.xlu0.b32.cont [10/16] 0.0, 128
      %782 = vxpose.xlu0.b32.cont [11/16] 0.0, 128
      %783 = vxpose.xlu0.b32.cont [12/16] 0.0, 128
      %784 = vxpose.xlu0.b32.cont [13/16] 0.0, 128
      %785 = vxpose.xlu0.b32.cont [14/16] 0.0, 128
      %786 = vxpose.xlu0.b32.cont [15/16] 0.0, 128
      %787 = vxpose.xlu0.b32.end [16/16] 0.0, 128
      %v788 = vpop.trf.xlu0
      %v789 = vpop.trf.xlu0
      %v790 = vpop.trf.xlu0
      %v791 = vpop.trf.xlu0
      %v792 = vpop.trf.xlu0
      %v793 = vpop.trf.xlu0
      %v794 = vpop.trf.xlu0
      %v795 = vpop.trf.xlu0
      %v796 = vpop.trf.xlu0
      %v797 = vpop.trf.xlu0
      %v798 = vpop.trf.xlu0
      %v799 = vpop.trf.xlu0
      %v800 = vpop.trf.xlu0
      %v801 = vpop.trf.xlu0
      %v802 = vpop.trf.xlu0
      %v803 = vpop.trf.xlu0
      %804 = vxpose.xlu0.b32.start [1/16] %v626, 128
      %805 = vxpose.xlu0.b32.cont [2/16] %v627, 128
      %806 = vxpose.xlu0.b32.cont [3/16] 0.0, 128
      %807 = vxpose.xlu0.b32.cont [4/16] 0.0, 128
      %808 = vxpose.xlu0.b32.cont [5/16] 0.0, 128
      %809 = vxpose.xlu0.b32.cont [6/16] 0.0, 128
      %810 = vxpose.xlu0.b32.cont [7/16] 0.0, 128
      %811 = vxpose.xlu0.b32.cont [8/16] 0.0, 128
      %812 = vxpose.xlu0.b32.cont [9/16] 0.0, 128
      %813 = vxpose.xlu0.b32.cont [10/16] 0.0, 128
      %814 = vxpose.xlu0.b32.cont [11/16] 0.0, 128
      %815 = vxpose.xlu0.b32.cont [12/16] 0.0, 128
      %816 = vxpose.xlu0.b32.cont [13/16] 0.0, 128
      %817 = vxpose.xlu0.b32.cont [14/16] 0.0, 128
      %818 = vxpose.xlu0.b32.cont [15/16] 0.0, 128
      %819 = vxpose.xlu0.b32.end [16/16] 0.0, 128
      %v820 = vpop.trf.xlu0
      %v821 = vpop.trf.xlu0
      %v822 = vpop.trf.xlu0
      %v823 = vpop.trf.xlu0
      %v824 = vpop.trf.xlu0
      %v825 = vpop.trf.xlu0
      %v826 = vpop.trf.xlu0
      %v827 = vpop.trf.xlu0
      %v828 = vpop.trf.xlu0
      %v829 = vpop.trf.xlu0
      %v830 = vpop.trf.xlu0
      %v831 = vpop.trf.xlu0
      %v832 = vpop.trf.xlu0
      %v833 = vpop.trf.xlu0
      %v834 = vpop.trf.xlu0
      %v835 = vpop.trf.xlu0
      %836 = vxpose.xlu0.b32.start [1/16] %v660, 128
      %837 = vxpose.xlu0.b32.cont [2/16] %v661, 128
      %838 = vxpose.xlu0.b32.cont [3/16] %v692, 128
      %839 = vxpose.xlu0.b32.cont [4/16] %v693, 128
      %840 = vxpose.xlu0.b32.cont [5/16] %v724, 128
      %841 = vxpose.xlu0.b32.cont [6/16] %v725, 128
      %842 = vxpose.xlu0.b32.cont [7/16] %v756, 128
      %843 = vxpose.xlu0.b32.cont [8/16] %v757, 128
      %844 = vxpose.xlu0.b32.cont [9/16] %v788, 128
      %845 = vxpose.xlu0.b32.cont [10/16] %v789, 128
      %846 = vxpose.xlu0.b32.cont [11/16] %v820, 128
      %847 = vxpose.xlu0.b32.cont [12/16] %v821, 128
      %848 = vxpose.xlu0.b32.cont [13/16] 0.0, 128
      %849 = vxpose.xlu0.b32.cont [14/16] 0.0, 128
      %850 = vxpose.xlu0.b32.cont [15/16] 0.0, 128
      %851 = vxpose.xlu0.b32.end [16/16] 0.0, 128
      %v852 = vpop.trf.xlu0
      %v853 = vpop.trf.xlu0
      %v854 = vpop.trf.xlu0
      %v855 = vpop.trf.xlu0
      %v856 = vpop.trf.xlu0
      %v857 = vpop.trf.xlu0
      %v858 = vpop.trf.xlu0
      %v859 = vpop.trf.xlu0
      %v860 = vpop.trf.xlu0
      %v861 = vpop.trf.xlu0
      %v862 = vpop.trf.xlu0
      %v863 = vpop.trf.xlu0
      %v864 = vpop.trf.xlu0
      %v865 = vpop.trf.xlu0
      %v866 = vpop.trf.xlu0
      %v867 = vpop.trf.xlu0
      %v868 = vadd.f32 %v642, 1.0
      %v869 = vadd.f32 %v868, 1e-06
      %v870 = vrcp.pop %v869
      %v871 = vmul.f32 %v642, %v870
      %v872 = vmul.f32 %v852, %v870
      %v873 = vsub.f32 0.0, %v871
      %v874 = vmul.f32 %v642, 2.0
      %v875 = vadd.f32 %v874, 1.0
      %v877 = vrot.slane %v873, 7
      %v879 = vmul.f32 %v642, %v877
      %v880 = vadd.f32 %v875, %v879
      %v881 = vadd.f32 %v880, 1e-06
      %v882 = vrcp.pop %v881
      %v883 = vmul.f32 %v642, %v882
      %v884 = vmul.f32 %v852, %v882
      %v886 = vrot.slane %v872, 7
      %v888 = vmul.f32 %v883, %v886
      %v889 = vadd.f32 %v884, %v888
      %v890 = vsub.f32 0.0, %v883
      %v892 = vrot.slane %v890, 7
      %v894 = vmul.f32 %v642, %v892
      %v895 = vadd.f32 %v875, %v894
      %v896 = vadd.f32 %v895, 1e-06
      %v897 = vrcp.pop %v896
      %v898 = vmul.f32 %v642, %v897
      %v899 = vmul.f32 %v852, %v897
      %v901 = vrot.slane %v889, 7
      %v903 = vmul.f32 %v898, %v901
      %v904 = vadd.f32 %v899, %v903
      %v905 = vsub.f32 0.0, %v898
      %v907 = vrot.slane %v905, 7
      %v909 = vmul.f32 %v642, %v907
      %v910 = vadd.f32 %v875, %v909
      %v911 = vadd.f32 %v910, 1e-06
      %v912 = vrcp.pop %v911
      %v913 = vmul.f32 %v642, %v912
      %v914 = vmul.f32 %v852, %v912
      %v916 = vrot.slane %v904, 7
      %v918 = vmul.f32 %v913, %v916
      %v919 = vadd.f32 %v914, %v918
      %v920 = vsub.f32 0.0, %v913
      %v922 = vrot.slane %v920, 7
      %v924 = vmul.f32 %v642, %v922
      %v925 = vadd.f32 %v875, %v924
      %v926 = vadd.f32 %v925, 1e-06
      %v927 = vrcp.pop %v926
      %v928 = vmul.f32 %v642, %v927
      %v929 = vmul.f32 %v852, %v927
      %v931 = vrot.slane %v919, 7
      %v933 = vmul.f32 %v928, %v931
      %v934 = vadd.f32 %v929, %v933
      %v935 = vsub.f32 0.0, %v928
      %v937 = vrot.slane %v935, 7
      %v939 = vmul.f32 %v642, %v937
      %v940 = vadd.f32 %v875, %v939
      %v941 = vadd.f32 %v940, 1e-06
      %v942 = vrcp.pop %v941
      %v943 = vmul.f32 %v642, %v942
      %v944 = vmul.f32 %v852, %v942
      %v946 = vrot.slane %v934, 7
      %v948 = vmul.f32 %v943, %v946
      %v949 = vadd.f32 %v944, %v948
      %v950 = vsub.f32 0.0, %v943
      %v952 = vrot.slane %v950, 7
      %v954 = vmul.f32 %v642, %v952
      %v955 = vadd.f32 %v875, %v954
      %v956 = vadd.f32 %v955, 1e-06
      %v957 = vrcp.pop %v956
      %v958 = vmul.f32 %v642, %v957
      %v959 = vmul.f32 %v852, %v957
      %v961 = vrot.slane %v949, 7
      %v963 = vmul.f32 %v958, %v961
      %v964 = vadd.f32 %v959, %v963
      %v965 = vsub.f32 0.0, %v958
      %v967 = vrot.slane %v965, 7
      %v969 = vmul.f32 %v642, %v967
      %v970 = vadd.f32 %v875, %v969
      %v971 = vadd.f32 %v970, 1e-06
      %v972 = vrcp.pop %v971
      %v973 = vmul.f32 %v642, %v972
      %v974 = vmul.f32 %v852, %v972
      %v976 = vrot.slane %v964, 7
      %v978 = vmul.f32 %v973, %v976
      %v979 = vadd.f32 %v974, %v978
      %v980 = vsub.f32 0.0, %v973
      %v981 = vmul.f32 %v643, 2.0
      %v982 = vadd.f32 %v981, 1.0
      %v984 = vrot.slane %v980, 7
      %v986 = vmul.f32 %v643, %v984
      %v987 = vadd.f32 %v982, %v986
      %v988 = vadd.f32 %v987, 1e-06
      %v989 = vrcp.pop %v988
      %v990 = vmul.f32 %v643, %v989
      %v991 = vmul.f32 %v853, %v989
      %v993 = vrot.slane %v979, 7
      %v995 = vmul.f32 %v990, %v993
      %v996 = vadd.f32 %v991, %v995
      %v997 = vsub.f32 0.0, %v990
      %v999 = vrot.slane %v997, 7
      %v1001 = vmul.f32 %v643, %v999
      %v1002 = vadd.f32 %v982, %v1001
      %v1003 = vadd.f32 %v1002, 1e-06
      %v1004 = vrcp.pop %v1003
      %v1005 = vmul.f32 %v643, %v1004
      %v1006 = vmul.f32 %v853, %v1004
      %v1008 = vrot.slane %v996, 7
      %v1010 = vmul.f32 %v1005, %v1008
      %v1011 = vadd.f32 %v1006, %v1010
      %v1012 = vsub.f32 0.0, %v1005
      %v1014 = vrot.slane %v1012, 7
      %v1016 = vmul.f32 %v643, %v1014
      %v1017 = vadd.f32 %v982, %v1016
      %v1018 = vadd.f32 %v1017, 1e-06
      %v1019 = vrcp.pop %v1018
      %v1020 = vmul.f32 %v643, %v1019
      %v1021 = vmul.f32 %v853, %v1019
      %v1023 = vrot.slane %v1011, 7
      %v1025 = vmul.f32 %v1020, %v1023
      %v1026 = vadd.f32 %v1021, %v1025
      %v1027 = vsub.f32 0.0, %v1020
      %v1029 = vrot.slane %v1027, 7
      %v1031 = vmul.f32 %v643, %v1029
      %v1032 = vadd.f32 %v982, %v1031
      %v1033 = vadd.f32 %v1032, 1e-06
      %v1034 = vrcp.pop %v1033
      %v1035 = vmul.f32 %v643, %v1034
      %v1036 = vmul.f32 %v853, %v1034
      %v1038 = vrot.slane %v1026, 7
      %v1040 = vmul.f32 %v1035, %v1038
      %v1041 = vadd.f32 %v1036, %v1040
      %v1042 = vsub.f32 0.0, %v1035
      %v1044 = vrot.slane %v1042, 7
      %v1046 = vmul.f32 %v643, %v1044
      %v1047 = vadd.f32 %v982, %v1046
      %v1048 = vadd.f32 %v1047, 1e-06
      %v1049 = vrcp.pop %v1048
      %v1050 = vmul.f32 %v643, %v1049
      %v1051 = vmul.f32 %v853, %v1049
      %v1053 = vrot.slane %v1041, 7
      %v1055 = vmul.f32 %v1050, %v1053
      %v1056 = vadd.f32 %v1051, %v1055
      %v1057 = vsub.f32 0.0, %v1050
      %v1059 = vrot.slane %v1057, 7
      %v1061 = vmul.f32 %v643, %v1059
      %v1062 = vadd.f32 %v982, %v1061
      %v1063 = vadd.f32 %v1062, 1e-06
      %v1064 = vrcp.pop %v1063
      %v1065 = vmul.f32 %v643, %v1064
      %v1066 = vmul.f32 %v853, %v1064
      %v1068 = vrot.slane %v1056, 7
      %v1070 = vmul.f32 %v1065, %v1068
      %v1071 = vadd.f32 %v1066, %v1070
      %v1072 = vsub.f32 0.0, %v1065
      %v1074 = vrot.slane %v1072, 7
      %v1076 = vmul.f32 %v643, %v1074
      %v1077 = vadd.f32 %v982, %v1076
      %v1078 = vadd.f32 %v1077, 1e-06
      %v1079 = vrcp.pop %v1078
      %v1080 = vmul.f32 %v643, %v1079
      %v1081 = vmul.f32 %v853, %v1079
      %v1083 = vrot.slane %v1071, 7
      %v1085 = vmul.f32 %v1080, %v1083
      %v1086 = vadd.f32 %v1081, %v1085
      %v1087 = vsub.f32 0.0, %v1080
      %v1088 = vadd.f32 %v643, 1.0
      %v1090 = vrot.slane %v1087, 7
      %v1092 = vmul.f32 %v643, %v1090
      %v1093 = vadd.f32 %v1088, %v1092
      %v1094 = vadd.f32 %v1093, 1e-06
      %v1095 = vrcp.pop %v1094
      %v1096 = vmul.f32 %v643, %v1095
      %v1097 = vmul.f32 %v853, %v1095
      %v1099 = vrot.slane %v1086, 7
      %v1101 = vmul.f32 %v1096, %v1099
      %v1102 = vadd.f32 %v1097, %v1101
      %1103 = vst.msk [vmem:[#allocation2 + $0x8] sm:$0x80] %vm499, %v1102
      %v1105 = vrot.slane %v1102, 1
      %v1107 = vmul.f32 %v1087, %v1105
      %v1108 = vsub.f32 %v1086, %v1107
      %1109 = vst.msk [vmem:[#allocation2 + $0x8] sm:$0x40] %vm506, %v1108
      %v1111 = vrot.slane %v1108, 1
      %v1113 = vmul.f32 %v1072, %v1111
      %v1114 = vsub.f32 %v1071, %v1113
      %1115 = vst.msk [vmem:[#allocation2 + $0x8] sm:$0x20] %vm513, %v1114
      %v1117 = vrot.slane %v1114, 1
      %v1119 = vmul.f32 %v1057, %v1117
      %v1120 = vsub.f32 %v1056, %v1119
      %1121 = vst.msk [vmem:[#allocation2 + $0x8] sm:$0x10] %vm520, %v1120
      %v1123 = vrot.slane %v1120, 1
      %v1125 = vmul.f32 %v1042, %v1123
      %v1126 = vsub.f32 %v1041, %v1125
      %1127 = vst.msk [vmem:[#allocation2 + $0x8] sm:$0x8] %vm527, %v1126
      %v1129 = vrot.slane %v1126, 1
      %v1131 = vmul.f32 %v1027, %v1129
      %v1132 = vsub.f32 %v1026, %v1131
      %1133 = vst.msk [vmem:[#allocation2 + $0x8] sm:$0x4] %vm534, %v1132
      %v1135 = vrot.slane %v1132, 1
      %v1137 = vmul.f32 %v1012, %v1135
      %v1138 = vsub.f32 %v1011, %v1137
      %1139 = vst.msk [vmem:[#allocation2 + $0x8] sm:$0x2] %vm541, %v1138
      %v1141 = vrot.slane %v1138, 1
      %v1143 = vmul.f32 %v997, %v1141
      %v1144 = vsub.f32 %v996, %v1143
      %1145 = vst.msk [vmem:[#allocation2 + $0x8] sm:$0x1] %vm548, %v1144
      %v1147 = vrot.slane %v1144, 1
      %v1149 = vmul.f32 %v980, %v1147
      %v1150 = vsub.f32 %v979, %v1149
      %1151 = vst.msk [vmem:[#allocation2] sm:$0x80] %vm499, %v1150
      %v1153 = vrot.slane %v1150, 1
      %v1155 = vmul.f32 %v965, %v1153
      %v1156 = vsub.f32 %v964, %v1155
      %1157 = vst.msk [vmem:[#allocation2] sm:$0x40] %vm506, %v1156
      %v1159 = vrot.slane %v1156, 1
      %v1161 = vmul.f32 %v950, %v1159
      %v1162 = vsub.f32 %v949, %v1161
      %1163 = vst.msk [vmem:[#allocation2] sm:$0x20] %vm513, %v1162
      %v1165 = vrot.slane %v1162, 1
      %v1167 = vmul.f32 %v935, %v1165
      %v1168 = vsub.f32 %v934, %v1167
      %1169 = vst.msk [vmem:[#allocation2] sm:$0x10] %vm520, %v1168
      %v1171 = vrot.slane %v1168, 1
      %v1173 = vmul.f32 %v920, %v1171
      %v1174 = vsub.f32 %v919, %v1173
      %1175 = vst.msk [vmem:[#allocation2] sm:$0x8] %vm527, %v1174
      %v1177 = vrot.slane %v1174, 1
      %v1179 = vmul.f32 %v905, %v1177
      %v1180 = vsub.f32 %v904, %v1179
      %1181 = vst.msk [vmem:[#allocation2] sm:$0x4] %vm534, %v1180
      %v1183 = vrot.slane %v1180, 1
      %v1185 = vmul.f32 %v890, %v1183
      %v1186 = vsub.f32 %v889, %v1185
      %1187 = vst.msk [vmem:[#allocation2] sm:$0x2] %vm541, %v1186
      %v1189 = vrot.slane %v1186, 1
      %v1191 = vmul.f32 %v873, %v1189
      %v1192 = vsub.f32 %v872, %v1191
      %1193 = vst.msk [vmem:[#allocation2] sm:$0x1] %vm548, %v1192
      %v1194 = vld [vmem:[#allocation2] sm:$0xff]
      %v1195 = vld [vmem:[#allocation2 + $0x8] sm:$0xff]
      %1196 = vxpose.xlu0.b32.start [1/16] %v1194, 128
      %1197 = vxpose.xlu0.b32.cont [2/16] %v1195, 128
      %1198 = vxpose.xlu0.b32.cont [3/16] 0.0, 128
      %1199 = vxpose.xlu0.b32.cont [4/16] 0.0, 128
      %1200 = vxpose.xlu0.b32.cont [5/16] 0.0, 128
      %1201 = vxpose.xlu0.b32.cont [6/16] 0.0, 128
      %1202 = vxpose.xlu0.b32.cont [7/16] 0.0, 128
      %1203 = vxpose.xlu0.b32.cont [8/16] 0.0, 128
      %1204 = vxpose.xlu0.b32.cont [9/16] 0.0, 128
      %1205 = vxpose.xlu0.b32.cont [10/16] 0.0, 128
      %1206 = vxpose.xlu0.b32.cont [11/16] 0.0, 128
      %1207 = vxpose.xlu0.b32.cont [12/16] 0.0, 128
      %1208 = vxpose.xlu0.b32.cont [13/16] 0.0, 128
      %1209 = vxpose.xlu0.b32.cont [14/16] 0.0, 128
      %1210 = vxpose.xlu0.b32.cont [15/16] 0.0, 128
      %1211 = vxpose.xlu0.b32.end [16/16] 0.0, 128
      %v1212 = vpop.trf.xlu0
      %v1213 = vpop.trf.xlu0
      %v1214 = vpop.trf.xlu0
      %v1215 = vpop.trf.xlu0
      %v1216 = vpop.trf.xlu0
      %v1217 = vpop.trf.xlu0
      %v1218 = vpop.trf.xlu0
      %v1219 = vpop.trf.xlu0
      %v1220 = vpop.trf.xlu0
      %v1221 = vpop.trf.xlu0
      %v1222 = vpop.trf.xlu0
      %v1223 = vpop.trf.xlu0
      %v1224 = vpop.trf.xlu0
      %v1225 = vpop.trf.xlu0
      %v1226 = vpop.trf.xlu0
      %v1227 = vpop.trf.xlu0
      %1228 = vxpose.xlu0.b32.start [1/16] %v1212, 128
      %1229 = vxpose.xlu0.b32.cont [2/16] %v1213, 128
      %1230 = vxpose.xlu0.b32.cont [3/16] 0.0, 128
      %1231 = vxpose.xlu0.b32.cont [4/16] 0.0, 128
      %1232 = vxpose.xlu0.b32.cont [5/16] 0.0, 128
      %1233 = vxpose.xlu0.b32.cont [6/16] 0.0, 128
      %1234 = vxpose.xlu0.b32.cont [7/16] 0.0, 128
      %1235 = vxpose.xlu0.b32.cont [8/16] 0.0, 128
      %1236 = vxpose.xlu0.b32.cont [9/16] 0.0, 128
      %1237 = vxpose.xlu0.b32.cont [10/16] 0.0, 128
      %1238 = vxpose.xlu0.b32.cont [11/16] 0.0, 128
      %1239 = vxpose.xlu0.b32.cont [12/16] 0.0, 128
      %1240 = vxpose.xlu0.b32.cont [13/16] 0.0, 128
      %1241 = vxpose.xlu0.b32.cont [14/16] 0.0, 128
      %1242 = vxpose.xlu0.b32.cont [15/16] 0.0, 128
      %1243 = vxpose.xlu0.b32.end [16/16] 0.0, 128
      %v1244 = vpop.trf.xlu0
      %v1245 = vpop.trf.xlu0
      %v1246 = vpop.trf.xlu0
      %v1247 = vpop.trf.xlu0
      %v1248 = vpop.trf.xlu0
      %v1249 = vpop.trf.xlu0
      %v1250 = vpop.trf.xlu0
      %v1251 = vpop.trf.xlu0
      %v1252 = vpop.trf.xlu0
      %v1253 = vpop.trf.xlu0
      %v1254 = vpop.trf.xlu0
      %v1255 = vpop.trf.xlu0
      %v1256 = vpop.trf.xlu0
      %v1257 = vpop.trf.xlu0
      %v1258 = vpop.trf.xlu0
      %v1259 = vpop.trf.xlu0
      %1260 = vxpose.xlu0.b32.start [1/16] %v1214, 128
      %1261 = vxpose.xlu0.b32.cont [2/16] %v1215, 128
      %1262 = vxpose.xlu0.b32.cont [3/16] 0.0, 128
      %1263 = vxpose.xlu0.b32.cont [4/16] 0.0, 128
      %1264 = vxpose.xlu0.b32.cont [5/16] 0.0, 128
      %1265 = vxpose.xlu0.b32.cont [6/16] 0.0, 128
      %1266 = vxpose.xlu0.b32.cont [7/16] 0.0, 128
      %1267 = vxpose.xlu0.b32.cont [8/16] 0.0, 128
      %1268 = vxpose.xlu0.b32.cont [9/16] 0.0, 128
      %1269 = vxpose.xlu0.b32.cont [10/16] 0.0, 128
      %1270 = vxpose.xlu0.b32.cont [11/16] 0.0, 128
      %1271 = vxpose.xlu0.b32.cont [12/16] 0.0, 128
      %1272 = vxpose.xlu0.b32.cont [13/16] 0.0, 128
      %1273 = vxpose.xlu0.b32.cont [14/16] 0.0, 128
      %1274 = vxpose.xlu0.b32.cont [15/16] 0.0, 128
      %1275 = vxpose.xlu0.b32.end [16/16] 0.0, 128
      %v1276 = vpop.trf.xlu0
      %v1277 = vpop.trf.xlu0
      %v1278 = vpop.trf.xlu0
      %v1279 = vpop.trf.xlu0
      %v1280 = vpop.trf.xlu0
      %v1281 = vpop.trf.xlu0
      %v1282 = vpop.trf.xlu0
      %v1283 = vpop.trf.xlu0
      %v1284 = vpop.trf.xlu0
      %v1285 = vpop.trf.xlu0
      %v1286 = vpop.trf.xlu0
      %v1287 = vpop.trf.xlu0
      %v1288 = vpop.trf.xlu0
      %v1289 = vpop.trf.xlu0
      %v1290 = vpop.trf.xlu0
      %v1291 = vpop.trf.xlu0
      %1292 = vxpose.xlu0.b32.start [1/16] %v1216, 128
      %1293 = vxpose.xlu0.b32.cont [2/16] %v1217, 128
      %1294 = vxpose.xlu0.b32.cont [3/16] 0.0, 128
      %1295 = vxpose.xlu0.b32.cont [4/16] 0.0, 128
      %1296 = vxpose.xlu0.b32.cont [5/16] 0.0, 128
      %1297 = vxpose.xlu0.b32.cont [6/16] 0.0, 128
      %1298 = vxpose.xlu0.b32.cont [7/16] 0.0, 128
      %1299 = vxpose.xlu0.b32.cont [8/16] 0.0, 128
      %1300 = vxpose.xlu0.b32.cont [9/16] 0.0, 128
      %1301 = vxpose.xlu0.b32.cont [10/16] 0.0, 128
      %1302 = vxpose.xlu0.b32.cont [11/16] 0.0, 128
      %1303 = vxpose.xlu0.b32.cont [12/16] 0.0, 128
      %1304 = vxpose.xlu0.b32.cont [13/16] 0.0, 128
      %1305 = vxpose.xlu0.b32.cont [14/16] 0.0, 128
      %1306 = vxpose.xlu0.b32.cont [15/16] 0.0, 128
      %1307 = vxpose.xlu0.b32.end [16/16] 0.0, 128
      %v1308 = vpop.trf.xlu0
      %v1309 = vpop.trf.xlu0
      %v1310 = vpop.trf.xlu0
      %v1311 = vpop.trf.xlu0
      %v1312 = vpop.trf.xlu0
      %v1313 = vpop.trf.xlu0
      %v1314 = vpop.trf.xlu0
      %v1315 = vpop.trf.xlu0
      %v1316 = vpop.trf.xlu0
      %v1317 = vpop.trf.xlu0
      %v1318 = vpop.trf.xlu0
      %v1319 = vpop.trf.xlu0
      %v1320 = vpop.trf.xlu0
      %v1321 = vpop.trf.xlu0
      %v1322 = vpop.trf.xlu0
      %v1323 = vpop.trf.xlu0
      %1324 = vxpose.xlu0.b32.start [1/16] %v1218, 128
      %1325 = vxpose.xlu0.b32.cont [2/16] %v1219, 128
      %1326 = vxpose.xlu0.b32.cont [3/16] 0.0, 128
      %1327 = vxpose.xlu0.b32.cont [4/16] 0.0, 128
      %1328 = vxpose.xlu0.b32.cont [5/16] 0.0, 128
      %1329 = vxpose.xlu0.b32.cont [6/16] 0.0, 128
      %1330 = vxpose.xlu0.b32.cont [7/16] 0.0, 128
      %1331 = vxpose.xlu0.b32.cont [8/16] 0.0, 128
      %1332 = vxpose.xlu0.b32.cont [9/16] 0.0, 128
      %1333 = vxpose.xlu0.b32.cont [10/16] 0.0, 128
      %1334 = vxpose.xlu0.b32.cont [11/16] 0.0, 128
      %1335 = vxpose.xlu0.b32.cont [12/16] 0.0, 128
      %1336 = vxpose.xlu0.b32.cont [13/16] 0.0, 128
      %1337 = vxpose.xlu0.b32.cont [14/16] 0.0, 128
      %1338 = vxpose.xlu0.b32.cont [15/16] 0.0, 128
      %1339 = vxpose.xlu0.b32.end [16/16] 0.0, 128
      %v1340 = vpop.trf.xlu0
      %v1341 = vpop.trf.xlu0
      %v1342 = vpop.trf.xlu0
      %v1343 = vpop.trf.xlu0
      %v1344 = vpop.trf.xlu0
      %v1345 = vpop.trf.xlu0
      %v1346 = vpop.trf.xlu0
      %v1347 = vpop.trf.xlu0
      %v1348 = vpop.trf.xlu0
      %v1349 = vpop.trf.xlu0
      %v1350 = vpop.trf.xlu0
      %v1351 = vpop.trf.xlu0
      %v1352 = vpop.trf.xlu0
      %v1353 = vpop.trf.xlu0
      %v1354 = vpop.trf.xlu0
      %v1355 = vpop.trf.xlu0
      %1356 = vxpose.xlu0.b32.start [1/16] %v1220, 128
      %1357 = vxpose.xlu0.b32.cont [2/16] %v1221, 128
      %1358 = vxpose.xlu0.b32.cont [3/16] 0.0, 128
      %1359 = vxpose.xlu0.b32.cont [4/16] 0.0, 128
      %1360 = vxpose.xlu0.b32.cont [5/16] 0.0, 128
      %1361 = vxpose.xlu0.b32.cont [6/16] 0.0, 128
      %1362 = vxpose.xlu0.b32.cont [7/16] 0.0, 128
      %1363 = vxpose.xlu0.b32.cont [8/16] 0.0, 128
      %1364 = vxpose.xlu0.b32.cont [9/16] 0.0, 128
      %1365 = vxpose.xlu0.b32.cont [10/16] 0.0, 128
      %1366 = vxpose.xlu0.b32.cont [11/16] 0.0, 128
      %1367 = vxpose.xlu0.b32.cont [12/16] 0.0, 128
      %1368 = vxpose.xlu0.b32.cont [13/16] 0.0, 128
      %1369 = vxpose.xlu0.b32.cont [14/16] 0.0, 128
      %1370 = vxpose.xlu0.b32.cont [15/16] 0.0, 128
      %1371 = vxpose.xlu0.b32.end [16/16] 0.0, 128
      %v1372 = vpop.trf.xlu0
      %v1373 = vpop.trf.xlu0
      %v1374 = vpop.trf.xlu0
      %v1375 = vpop.trf.xlu0
      %v1376 = vpop.trf.xlu0
      %v1377 = vpop.trf.xlu0
      %v1378 = vpop.trf.xlu0
      %v1379 = vpop.trf.xlu0
      %v1380 = vpop.trf.xlu0
      %v1381 = vpop.trf.xlu0
      %v1382 = vpop.trf.xlu0
      %v1383 = vpop.trf.xlu0
      %v1384 = vpop.trf.xlu0
      %v1385 = vpop.trf.xlu0
      %v1386 = vpop.trf.xlu0
      %v1387 = vpop.trf.xlu0
      %1388 = vxpose.xlu0.b32.start [1/16] %v1222, 128
      %1389 = vxpose.xlu0.b32.cont [2/16] %v1223, 128
      %1390 = vxpose.xlu0.b32.cont [3/16] 0.0, 128
      %1391 = vxpose.xlu0.b32.cont [4/16] 0.0, 128
      %1392 = vxpose.xlu0.b32.cont [5/16] 0.0, 128
      %1393 = vxpose.xlu0.b32.cont [6/16] 0.0, 128
      %1394 = vxpose.xlu0.b32.cont [7/16] 0.0, 128
      %1395 = vxpose.xlu0.b32.cont [8/16] 0.0, 128
      %1396 = vxpose.xlu0.b32.cont [9/16] 0.0, 128
      %1397 = vxpose.xlu0.b32.cont [10/16] 0.0, 128
      %1398 = vxpose.xlu0.b32.cont [11/16] 0.0, 128
      %1399 = vxpose.xlu0.b32.cont [12/16] 0.0, 128
      %1400 = vxpose.xlu0.b32.cont [13/16] 0.0, 128
      %1401 = vxpose.xlu0.b32.cont [14/16] 0.0, 128
      %1402 = vxpose.xlu0.b32.cont [15/16] 0.0, 128
      %1403 = vxpose.xlu0.b32.end [16/16] 0.0, 128
      %v1404 = vpop.trf.xlu0
      %v1405 = vpop.trf.xlu0
      %v1406 = vpop.trf.xlu0
      %v1407 = vpop.trf.xlu0
      %v1408 = vpop.trf.xlu0
      %v1409 = vpop.trf.xlu0
      %v1410 = vpop.trf.xlu0
      %v1411 = vpop.trf.xlu0
      %v1412 = vpop.trf.xlu0
      %v1413 = vpop.trf.xlu0
      %v1414 = vpop.trf.xlu0
      %v1415 = vpop.trf.xlu0
      %v1416 = vpop.trf.xlu0
      %v1417 = vpop.trf.xlu0
      %v1418 = vpop.trf.xlu0
      %v1419 = vpop.trf.xlu0
      %1420 = vst.msk [vmem:[#allocation13] sm:$0xff] %vm119, %v1244
      %1421 = vst.msk [vmem:[#allocation13 + $0x8] sm:$0xff] %vm119, %v1245
      %1422 = vst.msk [vmem:[#allocation13 + $0x10] sm:$0xff] %vm119, %v1276
      %1423 = vst.msk [vmem:[#allocation13 + $0x18] sm:$0xff] %vm119, %v1277
      %1424 = vst.msk [vmem:[#allocation13 + $0x20] sm:$0xff] %vm119, %v1308
      %1425 = vst.msk [vmem:[#allocation13 + $0x28] sm:$0xff] %vm119, %v1309
      %1426 = vst.msk [vmem:[#allocation13 + $0x30] sm:$0xff] %vm119, %v1340
      %1427 = vst.msk [vmem:[#allocation13 + $0x38] sm:$0xff] %vm119, %v1341
      %1428 = vst.msk [vmem:[#allocation13 + $0x40] sm:$0xff] %vm119, %v1372
      %1429 = vst.msk [vmem:[#allocation13 + $0x48] sm:$0xff] %vm119, %v1373
      %1430 = vst.msk [vmem:[#allocation13 + $0x50] sm:$0xff] %vm119, %v1404
      %1431 = vst.msk [vmem:[#allocation13 + $0x58] sm:$0xff] %vm119, %v1405
    $region50: #{tpu_custom_call.1} parent=1 // loop_footer
      %s137 = sadd.s32 1, %s133
    $region51: #{tpu_custom_call.1} parent=1 // loop_footer_branch
      %132 = sbr.rel target = $region47
    $region52: #{tpu_custom_call.1} parent=1 // loop_exit
      _
    // Predicated region
    $region53: #{tpu_custom_call.1} parent=1 // pred_check
      _
    $region54: #{tpu_custom_call.1} parent=1 // pred_check_branch
      %1433 = sbr.rel (0) target = $region56
    $region55: #{tpu_custom_call.1} parent=1 // pred_region
      %s1435 = ssub.s32 1536, 1536
      %1436 = vsyncadd [#allocation5], %s1435
      %s1437 = sshll.u32 [#allocation13], 4
      %s1438 = int_to_ptr.vmem [resolvable:$true] %s1437
      %1443 = dma.vmem_to_hbm [thread:$0]  %s1438, 1536, %s6, [#allocation5], 128, 128, 8
    $region56: #{tpu_custom_call.1} parent=1 // pred_fallthru
      _
    // Predicated region
    $region57: #{tpu_custom_call.1} parent=1 // pred_check
      _
    $region58: #{tpu_custom_call.1} parent=1 // pred_check_branch
      %1445 = sbr.rel (0) target = $region60
    $region59: #{tpu_custom_call.1} parent=1 // pred_region
      %1446 = dma.done [#allocation5], 1536
    $region60: #{tpu_custom_call.1} parent=1 // pred_fallthru
      _
    %1447 = vsyncpa [#allocation4], 1
    %1448 = vsyncpa [#allocation9], 1
    %1449 = vsyncpa [#allocation12], 1
    %1450 = vsyncpa [#allocation5], 1
    %1451 = vsyncpa [#allocation6], 1

</llo_original>
